<compile_context>
chip_gen: v7x
topology: tpu7x:2x2x1
jax: 0.10.0
libtpu: 0.0.40
codegen_flags: <defaults>
</compile_context>

<pallas_src>
import functools

import jax
import jax.numpy as jnp
from jax.experimental import pallas as pl
from jax.experimental.pallas import tpu as pltpu


def _round_up(n: int, m: int) -> int:
    return ((n + m - 1) // m) * m


def _efficient_attention_kernel(
        # inputs
        x_q_ref, x_kv_ref,
        wq_ref, bq_ref, wk_ref, bk_ref, wv_ref, bv_ref, wp_ref, bp_ref,
        # outputs
        o_ref,
        # scratch
        q_scratch, m_scratch, l_scratch, acc_scratch,
        *, n_valid, tile_kv, needs_mask, compute_dtype):
    """One (batch, q-tile, kv-tile) grid step.

    Shapes (channel-major, spatial axis on lanes):
      x_q_ref / x_kv_ref : (1, C, TQ) / (1, C, TK)
      wq/wk/wv : (Cr, C), bq/bk/bv : (Cr, 1)   (softmax scale folded into wq/bq)
      wp : (C, Cr), bp : (C, 1)
      o_ref : (1, C, TQ)
      q_scratch/acc_scratch : (Cr, TQ), m_scratch/l_scratch : (1, TQ)
    """
    ki = pl.program_id(2)
    nk = pl.num_programs(2)

    @pl.when(ki == 0)
    def _init():
        # q projection for this query tile (scale already folded into wq/bq).
        q = jnp.dot(wq_ref[...], x_q_ref[0],
                    preferred_element_type=jnp.float32) + bq_ref[...]
        q_scratch[...] = q
        m_scratch[...] = jnp.full(m_scratch.shape, -jnp.inf, dtype=m_scratch.dtype)
        l_scratch[...] = jnp.zeros_like(l_scratch)
        acc_scratch[...] = jnp.zeros_like(acc_scratch)

    # k / v projections for this kv tile: (Cr, TK), channel-major (lane-dense).
    x_kv = x_kv_ref[0]
    k = jnp.dot(wk_ref[...], x_kv, preferred_element_type=jnp.float32) + bk_ref[...]
    v = jnp.dot(wv_ref[...], x_kv, preferred_element_type=jnp.float32) + bv_ref[...]

    # s[j, i] = sum_c k[c, j] * q_scaled[c, i]  (== attn[i, j] of the reference).
    # Only a tiny (Cr, TK) transpose of k; no N x N transpose anywhere.
    s = jnp.dot(k.T, q_scratch[...], preferred_element_type=jnp.float32)  # (TK, TQ)

    if needs_mask:
        kv_pos = ki * tile_kv + jax.lax.broadcasted_iota(jnp.int32, (tile_kv, 1), 0)
        s = jnp.where(kv_pos < n_valid, s, -1e30)

    # Online softmax over the kv (sublane) axis; running stats stay lane-dense (1, TQ).
    m_prev = m_scratch[...]
    m_new = jnp.maximum(m_prev, jnp.max(s, axis=0, keepdims=True))
    alpha = jnp.exp(m_prev - m_new)                        # (1, TQ)
    p = jnp.exp(s - m_new)                                 # (TK, TQ), f32
    l_scratch[...] = alpha * l_scratch[...] + jnp.sum(p, axis=0, keepdims=True)
    pv = jnp.dot(v.astype(compute_dtype), p.astype(compute_dtype),
                 preferred_element_type=jnp.float32)       # (Cr, TQ)
    acc_scratch[...] = alpha * acc_scratch[...] + pv
    m_scratch[...] = m_new

    @pl.when(ki == nk - 1)
    def _finalize():
        inv_l = pl.reciprocal(l_scratch[...], approx=True)       # EUP slot, ~free
        out = (acc_scratch[...] * inv_l).astype(compute_dtype)   # (Cr, TQ)
        y = jnp.dot(wp_ref[...], out,
                    preferred_element_type=jnp.float32) + bp_ref[...]
        o_ref[0] = y.astype(o_ref.dtype)


def efficient_attention(x, wqkv, bqkv, wproj, bproj, *,
                        heads=4, reduction=4, tile=256,
                        compute_dtype=jnp.float32,
                        vmem_limit_bytes=32 * 1024 * 1024):
    """x: (B, C, H, W) float32 (NCHW, same as the PyTorch module)."""
    B, C, H, W = x.shape
    N = H * W
    cr = C // reduction
    scale = float((C // heads) ** (-0.5))

    # Pad the spatial axis to a lane-dense multiple of 128 / the tile size.
    tile = min(tile, _round_up(N, 128))
    assert tile % 128 == 0, "tile must be a multiple of 128"
    n_pad = _round_up(N, tile)
    needs_mask = (n_pad != N)

    x_flat = x.reshape(B, C, N).astype(compute_dtype)
    if needs_mask:
        x_flat = jnp.pad(x_flat, ((0, 0), (0, 0), (0, n_pad - N)))

    # Split the fused qkv conv weight (avoids sub-sublane-tile slicing in-kernel)
    # and fold the softmax scale into the q projection.  Biases stay f32.
    wq = (wqkv[0 * cr:1 * cr] * scale).astype(compute_dtype)
    wk = wqkv[1 * cr:2 * cr].astype(compute_dtype)
    wv = wqkv[2 * cr:3 * cr].astype(compute_dtype)
    bq = (bqkv[0 * cr:1 * cr] * scale).reshape(cr, 1).astype(jnp.float32)
    bk = bqkv[1 * cr:2 * cr].reshape(cr, 1).astype(jnp.float32)
    bv = bqkv[2 * cr:3 * cr].reshape(cr, 1).astype(jnp.float32)
    wp = wproj.astype(compute_dtype)
    bp = bproj.reshape(C, 1).astype(jnp.float32)

    kernel = functools.partial(
        _efficient_attention_kernel,
        n_valid=N, tile_kv=tile, needs_mask=needs_mask,
        compute_dtype=compute_dtype)

    n_tiles = n_pad // tile
    const = lambda b, qi, ki: (0, 0)   # whole-array weight/bias blocks

    out_flat = pl.pallas_call(
        kernel,
        out_shape=jax.ShapeDtypeStruct((B, C, n_pad), x.dtype),
        grid_spec=pltpu.PrefetchScalarGridSpec(
            num_scalar_prefetch=0,
            grid=(B, n_tiles, n_tiles),
            in_specs=[
                pl.BlockSpec((1, C, tile), lambda b, qi, ki: (b, 0, qi)),  # x (q tile)
                pl.BlockSpec((1, C, tile), lambda b, qi, ki: (b, 0, ki)),  # x (kv tile)
                pl.BlockSpec((cr, C), const),   # wq (scaled)
                pl.BlockSpec((cr, 1), const),   # bq (scaled)
                pl.BlockSpec((cr, C), const),   # wk
                pl.BlockSpec((cr, 1), const),   # bk
                pl.BlockSpec((cr, C), const),   # wv
                pl.BlockSpec((cr, 1), const),   # bv
                pl.BlockSpec((C, cr), const),   # wproj
                pl.BlockSpec((C, 1), const),    # bproj
            ],
            out_specs=pl.BlockSpec((1, C, tile), lambda b, qi, ki: (b, 0, qi)),
            scratch_shapes=[
                pltpu.VMEM((cr, tile), jnp.float32),   # q tile (scaled)
                pltpu.VMEM((1, tile), jnp.float32),    # running max
                pltpu.VMEM((1, tile), jnp.float32),    # running sum
                pltpu.VMEM((cr, tile), jnp.float32),   # output accumulator
            ]),
        compiler_params=pltpu.CompilerParams(
            dimension_semantics=("parallel", "parallel", "arbitrary"),
            vmem_limit_bytes=vmem_limit_bytes),
    )(x_flat, x_flat, wq, bq, wk, bk, wv, bv, wp, bp)

    return out_flat[:, :, :N].reshape(B, C, H, W)


def _reference(x, wqkv, bqkv, wproj, bproj, *, heads=4, reduction=4):
    """Pure-JAX reference mirroring the PyTorch forward."""
    B, C, H, W = x.shape
    N = H * W
    cr = C // reduction
    scale = (C // heads) ** (-0.5)
    xf = x.reshape(B, C, N)
    qkv = jnp.einsum('oc,bcn->bon', wqkv, xf) + bqkv[None, :, None]   # (B, 3Cr, N)
    q, k, v = qkv[:, :cr], qkv[:, cr:2 * cr], qkv[:, 2 * cr:]
    attn = jnp.einsum('bcn,bcm->bnm', q, k) * scale                    # (B, N, N)
    attn = jax.nn.softmax(attn, axis=-1)
    out = jnp.einsum('bcn,bmn->bcm', v, attn)                          # (B, Cr, N)
    y = jnp.einsum('oc,bcn->bon', wproj, out) + bproj[None, :, None]   # (B, C, N)
    return y.reshape(B, C, H, W)


if __name__ == "__main__":
    # Small shapes consistent with the module: dim=16, heads=4, reduction=4, 8x8 maps.
    B, dim, H, W = 2, 16, 8, 8
    heads, reduction = 4, 4
    cr = dim // reduction

    key = jax.random.PRNGKey(0)
    kx, k1, k2, k3, k4 = jax.random.split(key, 5)

    x = jax.random.normal(kx, (B, dim, H, W), dtype=jnp.float32)
    # nn.Conv2d(dim, 3*(dim//reduction), 1): weight (3*Cr, dim, 1, 1) -> (3*Cr, dim)
    wqkv = jax.random.normal(k1, (3 * cr, dim), dtype=jnp.float32) * 0.1
    bqkv = jax.random.normal(k2, (3 * cr,), dtype=jnp.float32) * 0.1
    # nn.Conv2d(dim//reduction, dim, 1): weight (dim, Cr, 1, 1) -> (dim, Cr)
    wproj = jax.random.normal(k3, (dim, cr), dtype=jnp.float32) * 0.1
    bproj = jax.random.normal(k4, (dim,), dtype=jnp.float32) * 0.1

    ref = _reference(x, wqkv, bqkv, wproj, bproj, heads=heads, reduction=reduction)

    # f32 MXU operands (accurate path, default).
    out_f32 = efficient_attention(x, wqkv, bqkv, wproj, bproj,
                                  heads=heads, reduction=reduction,
                                  compute_dtype=jnp.float32)
    out_f32 = jax.block_until_ready(out_f32)
    assert out_f32.shape == (B, dim, H, W)
    assert jnp.allclose(out_f32, ref, atol=5e-3, rtol=5e-3), "f32 mismatch vs reference"

    # bf16 MXU operands, f32 accumulation / softmax (v5e/v6e/v7x fast path).
    out_bf16 = efficient_attention(x, wqkv, bqkv, wproj, bproj,
                                   heads=heads, reduction=reduction,
                                   compute_dtype=jnp.bfloat16)
    out_bf16 = jax.block_until_ready(out_bf16)
    assert jnp.allclose(out_bf16, ref, atol=5e-2, rtol=5e-2), "bf16 mismatch vs reference"

    print("KERNEL_OK")
</pallas_src>

<mosaic_0001>
module attributes {stable_mosaic.version = 11 : i64} {
  func.func @_efficient_attention_kernel(%arg0: i32, %arg1: i32, %arg2: i32, %arg3: memref<1x16x128xf32, #tpu.memory_space<vmem>>, %arg4: memref<1x16x128xf32, #tpu.memory_space<vmem>>, %arg5: memref<4x16xf32, #tpu.memory_space<vmem>>, %arg6: memref<4x1xf32, #tpu.memory_space<vmem>>, %arg7: memref<4x16xf32, #tpu.memory_space<vmem>>, %arg8: memref<4x1xf32, #tpu.memory_space<vmem>>, %arg9: memref<4x16xf32, #tpu.memory_space<vmem>>, %arg10: memref<4x1xf32, #tpu.memory_space<vmem>>, %arg11: memref<16x4xf32, #tpu.memory_space<vmem>>, %arg12: memref<16x1xf32, #tpu.memory_space<vmem>>, %arg13: memref<1x16x128xf32, #tpu.memory_space<vmem>>, %arg14: memref<4x128xf32, #tpu.memory_space<vmem>>, %arg15: memref<1x128xf32, #tpu.memory_space<vmem>>, %arg16: memref<1x128xf32, #tpu.memory_space<vmem>>, %arg17: memref<4x128xf32, #tpu.memory_space<vmem>>) attributes {dimension_semantics = [#tpu.dimension_semantics<parallel>, #tpu.dimension_semantics<parallel>, #tpu.dimension_semantics<arbitrary>], iteration_bounds = array<i64: 2, 1, 1>, scalar_prefetch = 0 : i64, scratch_operands = 4 : i64, tpu.core_type = #tpu.core_type<tc>, window_params = [{transform_indices = @transform_0, window_bounds = array<i64: 1, 16, 128>}, {transform_indices = @transform_1, window_bounds = array<i64: 1, 16, 128>}, {pipeline_mode = #tpu.pipeline_mode<synchronous>, transform_indices = @transform_2, window_bounds = array<i64: 4, 16>}, {pipeline_mode = #tpu.pipeline_mode<synchronous>, transform_indices = @transform_3, window_bounds = array<i64: 4, 1>}, {pipeline_mode = #tpu.pipeline_mode<synchronous>, transform_indices = @transform_4, window_bounds = array<i64: 4, 16>}, {pipeline_mode = #tpu.pipeline_mode<synchronous>, transform_indices = @transform_5, window_bounds = array<i64: 4, 1>}, {pipeline_mode = #tpu.pipeline_mode<synchronous>, transform_indices = @transform_6, window_bounds = array<i64: 4, 16>}, {pipeline_mode = #tpu.pipeline_mode<synchronous>, transform_indices = @transform_7, window_bounds = array<i64: 4, 1>}, {pipeline_mode = #tpu.pipeline_mode<synchronous>, transform_indices = @transform_8, window_bounds = array<i64: 16, 4>}, {pipeline_mode = #tpu.pipeline_mode<synchronous>, transform_indices = @transform_9, window_bounds = array<i64: 16, 1>}, {transform_indices = @transform_10, window_bounds = array<i64: 1, 16, 128>}]} {
    %c0_i32 = arith.constant 0 : i32
    %0 = arith.cmpi eq, %arg2, %c0_i32 : i32
    %1 = arith.extui %0 : i1 to i32
    %c0_i32_0 = arith.constant 0 : i32
    %2 = arith.cmpi ne, %1, %c0_i32_0 : i32
    scf.if %2 {
      %c0_33 = arith.constant 0 : index
      %c0_34 = arith.constant 0 : index
      %53 = vector.load %arg5[%c0_33, %c0_34] : memref<4x16xf32, #tpu.memory_space<vmem>>, vector<4x16xf32>
      %c0_35 = arith.constant 0 : index
      %c0_36 = arith.constant 0 : index
      %c0_37 = arith.constant 0 : index
      %54 = vector.load %arg3[%c0_35, %c0_36, %c0_37] : memref<1x16x128xf32, #tpu.memory_space<vmem>>, vector<1x16x128xf32>
      %55 = vector.shape_cast %54 : vector<1x16x128xf32> to vector<16x128xf32>
      %cst_38 = arith.constant dense<0.000000e+00> : vector<4x128xf32>
      %56 = tpu.matmul %53, %55, %cst_38 {dimension_numbers = #tpu.dot_dimension_numbers<[1], [0], [0], [1], [0, 0, 1, 1], [], []>} : vector<4x16xf32>, vector<16x128xf32>, vector<4x128xf32> -> vector<4x128xf32>
      %c0_39 = arith.constant 0 : index
      %c0_40 = arith.constant 0 : index
      %57 = vector.load %arg6[%c0_39, %c0_40] : memref<4x1xf32, #tpu.memory_space<vmem>>, vector<4x1xf32>
      %58 = vector.broadcast %57 : vector<4x1xf32> to vector<4x128xf32>
      %59 = arith.addf %56, %58 : vector<4x128xf32>
      %c0_41 = arith.constant 0 : index
      %c0_42 = arith.constant 0 : index
      %60 = vector.load %arg14[%c0_41, %c0_42] : memref<4x128xf32, #tpu.memory_space<vmem>>, vector<4x128xf32>
      tpu.vector_store %arg14[%c0_41, %c0_42], %59 {strides = array<i32>} : memref<4x128xf32, #tpu.memory_space<vmem>>, vector<4x128xf32>,
      %cst_43 = arith.constant 0xFF800000 : f32
      %61 = vector.broadcast %cst_43 : f32 to vector<1x128xf32>
      %c0_44 = arith.constant 0 : index
      %c0_45 = arith.constant 0 : index
      %62 = vector.load %arg15[%c0_44, %c0_45] : memref<1x128xf32, #tpu.memory_space<vmem>>, vector<1x128xf32>
      tpu.vector_store %arg15[%c0_44, %c0_45], %61 {strides = array<i32>} : memref<1x128xf32, #tpu.memory_space<vmem>>, vector<1x128xf32>,
      %cst_46 = arith.constant 0.000000e+00 : f32
      %63 = vector.broadcast %cst_46 : f32 to vector<1x128xf32>
      %c0_47 = arith.constant 0 : index
      %c0_48 = arith.constant 0 : index
      %64 = vector.load %arg16[%c0_47, %c0_48] : memref<1x128xf32, #tpu.memory_space<vmem>>, vector<1x128xf32>
      tpu.vector_store %arg16[%c0_47, %c0_48], %63 {strides = array<i32>} : memref<1x128xf32, #tpu.memory_space<vmem>>, vector<1x128xf32>,
      %cst_49 = arith.constant 0.000000e+00 : f32
      %65 = vector.broadcast %cst_49 : f32 to vector<4x128xf32>
      %c0_50 = arith.constant 0 : index
      %c0_51 = arith.constant 0 : index
      %66 = vector.load %arg17[%c0_50, %c0_51] : memref<4x128xf32, #tpu.memory_space<vmem>>, vector<4x128xf32>
      tpu.vector_store %arg17[%c0_50, %c0_51], %65 {strides = array<i32>} : memref<4x128xf32, #tpu.memory_space<vmem>>, vector<4x128xf32>,
    } else {
    }
    %c0 = arith.constant 0 : index
    %c0_1 = arith.constant 0 : index
    %c0_2 = arith.constant 0 : index
    %3 = vector.load %arg4[%c0, %c0_1, %c0_2] : memref<1x16x128xf32, #tpu.memory_space<vmem>>, vector<1x16x128xf32>
    %4 = vector.shape_cast %3 : vector<1x16x128xf32> to vector<16x128xf32>
    %c0_3 = arith.constant 0 : index
    %c0_4 = arith.constant 0 : index
    %5 = vector.load %arg7[%c0_3, %c0_4] : memref<4x16xf32, #tpu.memory_space<vmem>>, vector<4x16xf32>
    %cst = arith.constant dense<0.000000e+00> : vector<4x128xf32>
    %6 = tpu.matmul %5, %4, %cst {dimension_numbers = #tpu.dot_dimension_numbers<[1], [0], [0], [1], [0, 0, 1, 1], [], []>} : vector<4x16xf32>, vector<16x128xf32>, vector<4x128xf32> -> vector<4x128xf32>
    %c0_5 = arith.constant 0 : index
    %c0_6 = arith.constant 0 : index
    %7 = vector.load %arg8[%c0_5, %c0_6] : memref<4x1xf32, #tpu.memory_space<vmem>>, vector<4x1xf32>
    %8 = vector.broadcast %7 : vector<4x1xf32> to vector<4x128xf32>
    %9 = arith.addf %6, %8 : vector<4x128xf32>
    %c0_7 = arith.constant 0 : index
    %c0_8 = arith.constant 0 : index
    %10 = vector.load %arg9[%c0_7, %c0_8] : memref<4x16xf32, #tpu.memory_space<vmem>>, vector<4x16xf32>
    %cst_9 = arith.constant dense<0.000000e+00> : vector<4x128xf32>
    %11 = tpu.matmul %10, %4, %cst_9 {dimension_numbers = #tpu.dot_dimension_numbers<[1], [0], [0], [1], [0, 0, 1, 1], [], []>} : vector<4x16xf32>, vector<16x128xf32>, vector<4x128xf32> -> vector<4x128xf32>
    %c0_10 = arith.constant 0 : index
    %c0_11 = arith.constant 0 : index
    %12 = vector.load %arg10[%c0_10, %c0_11] : memref<4x1xf32, #tpu.memory_space<vmem>>, vector<4x1xf32>
    %13 = vector.broadcast %12 : vector<4x1xf32> to vector<4x128xf32>
    %14 = arith.addf %11, %13 : vector<4x128xf32>
    %15 = tpu.transpose %9, [1, 0] : vector<4x128xf32> -> vector<128x4xf32>
    %c0_12 = arith.constant 0 : index
    %c0_13 = arith.constant 0 : index
    %16 = vector.load %arg14[%c0_12, %c0_13] : memref<4x128xf32, #tpu.memory_space<vmem>>, vector<4x128xf32>
    %cst_14 = arith.constant dense<0.000000e+00> : vector<128x128xf32>
    %17 = tpu.matmul %15, %16, %cst_14 {dimension_numbers = #tpu.dot_dimension_numbers<[1], [0], [0], [1], [0, 0, 1, 1], [], []>} : vector<128x4xf32>, vector<4x128xf32>, vector<128x128xf32> -> vector<128x128xf32>
    %c128_i32 = arith.constant 128 : i32
    %18 = arith.muli %arg2, %c128_i32 : i32
    %19 = tpu.iota {dimensions = array<i32: 0>} : vector<128x1xi32>
    %20 = vector.broadcast %18 : i32 to vector<128x1xi32>
    %21 = arith.addi %20, %19 : vector<128x1xi32>
    %c64_i32 = arith.constant 64 : i32
    %22 = vector.broadcast %c64_i32 : i32 to vector<128x1xi32>
    %23 = arith.cmpi slt, %21, %22 : vector<128x1xi32>
    %cst_15 = arith.constant -1.000000e+30 : f32
    %24 = vector.shape_cast %23 : vector<128x1xi1> to vector<128x1xi1>
    %25 = vector.broadcast %24 : vector<128x1xi1> to vector<128x128xi1>
    %26 = vector.broadcast %cst_15 : f32 to vector<128x128xf32>
    %27 = arith.select %25, %17, %26 : vector<128x128xi1>, vector<128x128xf32>
    %c0_16 = arith.constant 0 : index
    %c0_17 = arith.constant 0 : index
    %28 = vector.load %arg15[%c0_16, %c0_17] : memref<1x128xf32, #tpu.memory_space<vmem>>, vector<1x128xf32>
    %cst_18 = arith.constant dense<0xFF800000> : vector<128xf32>
    %29 = vector.multi_reduction <maximumf>, %27, %cst_18 [0] : vector<128x128xf32> to vector<128xf32>
    %30 = vector.shape_cast %29 : vector<128xf32> to vector<1x128xf32>
    %31 = arith.maximumf %28, %30 : vector<1x128xf32>
    %32 = arith.subf %28, %31 : vector<1x128xf32>
    %33 = math.exp %32 : vector<1x128xf32>
    %34 = vector.broadcast %31 : vector<1x128xf32> to vector<128x128xf32>
    %35 = arith.subf %27, %34 : vector<128x128xf32>
    %36 = math.exp %35 : vector<128x128xf32>
    %c0_19 = arith.constant 0 : index
    %c0_20 = arith.constant 0 : index
    %37 = vector.load %arg16[%c0_19, %c0_20] : memref<1x128xf32, #tpu.memory_space<vmem>>, vector<1x128xf32>
    %38 = arith.mulf %33, %37 : vector<1x128xf32>
    %cst_21 = arith.constant dense<0.000000e+00> : vector<128xf32>
    %39 = vector.multi_reduction <add>, %36, %cst_21 [0] : vector<128x128xf32> to vector<128xf32>
    %40 = vector.shape_cast %39 : vector<128xf32> to vector<1x128xf32>
    %41 = arith.addf %38, %40 : vector<1x128xf32>
    %c0_22 = arith.constant 0 : index
    %c0_23 = arith.constant 0 : index
    %42 = vector.load %arg16[%c0_22, %c0_23] : memref<1x128xf32, #tpu.memory_space<vmem>>, vector<1x128xf32>
    tpu.vector_store %arg16[%c0_22, %c0_23], %41 {strides = array<i32>} : memref<1x128xf32, #tpu.memory_space<vmem>>, vector<1x128xf32>,
    %cst_24 = arith.constant dense<0.000000e+00> : vector<4x128xf32>
    %43 = tpu.matmul %14, %36, %cst_24 {dimension_numbers = #tpu.dot_dimension_numbers<[1], [0], [0], [1], [0, 0, 1, 1], [], []>} : vector<4x128xf32>, vector<128x128xf32>, vector<4x128xf32> -> vector<4x128xf32>
    %c0_25 = arith.constant 0 : index
    %c0_26 = arith.constant 0 : index
    %44 = vector.load %arg17[%c0_25, %c0_26] : memref<4x128xf32, #tpu.memory_space<vmem>>, vector<4x128xf32>
    %45 = vector.broadcast %33 : vector<1x128xf32> to vector<4x128xf32>
    %46 = arith.mulf %45, %44 : vector<4x128xf32>
    %47 = arith.addf %46, %43 : vector<4x128xf32>
    %c0_27 = arith.constant 0 : index
    %c0_28 = arith.constant 0 : index
    %48 = vector.load %arg17[%c0_27, %c0_28] : memref<4x128xf32, #tpu.memory_space<vmem>>, vector<4x128xf32>
    tpu.vector_store %arg17[%c0_27, %c0_28], %47 {strides = array<i32>} : memref<4x128xf32, #tpu.memory_space<vmem>>, vector<4x128xf32>,
    %c0_29 = arith.constant 0 : index
    %c0_30 = arith.constant 0 : index
    %49 = vector.load %arg15[%c0_29, %c0_30] : memref<1x128xf32, #tpu.memory_space<vmem>>, vector<1x128xf32>
    tpu.vector_store %arg15[%c0_29, %c0_30], %31 {strides = array<i32>} : memref<1x128xf32, #tpu.memory_space<vmem>>, vector<1x128xf32>,
    %c0_i32_31 = arith.constant 0 : i32
    %50 = arith.cmpi eq, %arg2, %c0_i32_31 : i32
    %51 = arith.extui %50 : i1 to i32
    %c0_i32_32 = arith.constant 0 : i32
    %52 = arith.cmpi ne, %51, %c0_i32_32 : i32
    scf.if %52 {
      %c0_33 = arith.constant 0 : index
      %c0_34 = arith.constant 0 : index
      %53 = vector.load %arg16[%c0_33, %c0_34] : memref<1x128xf32, #tpu.memory_space<vmem>>, vector<1x128xf32>
      %54 = tpu.reciprocal %53 {approx = true} : vector<1x128xf32> -> vector<1x128xf32>
      %c0_35 = arith.constant 0 : index
      %c0_36 = arith.constant 0 : index
      %55 = vector.load %arg17[%c0_35, %c0_36] : memref<4x128xf32, #tpu.memory_space<vmem>>, vector<4x128xf32>
      %56 = vector.broadcast %54 : vector<1x128xf32> to vector<4x128xf32>
      %57 = arith.mulf %55, %56 : vector<4x128xf32>
      %c0_37 = arith.constant 0 : index
      %c0_38 = arith.constant 0 : index
      %58 = vector.load %arg11[%c0_37, %c0_38] : memref<16x4xf32, #tpu.memory_space<vmem>>, vector<16x4xf32>
      %cst_39 = arith.constant dense<0.000000e+00> : vector<16x128xf32>
      %59 = tpu.matmul %58, %57, %cst_39 {dimension_numbers = #tpu.dot_dimension_numbers<[1], [0], [0], [1], [0, 0, 1, 1], [], []>} : vector<16x4xf32>, vector<4x128xf32>, vector<16x128xf32> -> vector<16x128xf32>
      %c0_40 = arith.constant 0 : index
      %c0_41 = arith.constant 0 : index
      %60 = vector.load %arg12[%c0_40, %c0_41] : memref<16x1xf32, #tpu.memory_space<vmem>>, vector<16x1xf32>
      %61 = vector.broadcast %60 : vector<16x1xf32> to vector<16x128xf32>
      %62 = arith.addf %59, %61 : vector<16x128xf32>
      %c0_42 = arith.constant 0 : index
      %c0_43 = arith.constant 0 : index
      %c0_44 = arith.constant 0 : index
      %63 = vector.load %arg13[%c0_42, %c0_43, %c0_44] : memref<1x16x128xf32, #tpu.memory_space<vmem>>, vector<1x16x128xf32>
      %64 = vector.shape_cast %63 : vector<1x16x128xf32> to vector<16x128xf32>
      %65 = vector.shape_cast %62 : vector<16x128xf32> to vector<1x16x128xf32>
      tpu.vector_store %arg13[%c0_42, %c0_43, %c0_44], %65 {strides = array<i32>} : memref<1x16x128xf32, #tpu.memory_space<vmem>>, vector<1x16x128xf32>,
    } else {
    }
    return
  }
  func.func @transform_0(%arg0: i32, %arg1: i32, %arg2: i32) -> (i32, i32, i32) {
    %c0_i32 = arith.constant 0 : i32
    %c0_i32_0 = arith.constant 0 : i32
    return %arg0, %c0_i32, %arg1 : i32, i32, i32
  }
  func.func @transform_1(%arg0: i32, %arg1: i32, %arg2: i32) -> (i32, i32, i32) {
    %c0_i32 = arith.constant 0 : i32
    %c0_i32_0 = arith.constant 0 : i32
    return %arg0, %c0_i32, %arg2 : i32, i32, i32
  }
  func.func @transform_2(%arg0: i32, %arg1: i32, %arg2: i32) -> (i32, i32) {
    %c0_i32 = arith.constant 0 : i32
    %c0_i32_0 = arith.constant 0 : i32
    %c0_i32_1 = arith.constant 0 : i32
    return %c0_i32, %c0_i32_0 : i32, i32
  }
  func.func @transform_3(%arg0: i32, %arg1: i32, %arg2: i32) -> (i32, i32) {
    %c0_i32 = arith.constant 0 : i32
    %c0_i32_0 = arith.constant 0 : i32
    %c0_i32_1 = arith.constant 0 : i32
    return %c0_i32, %c0_i32_0 : i32, i32
  }
  func.func @transform_4(%arg0: i32, %arg1: i32, %arg2: i32) -> (i32, i32) {
    %c0_i32 = arith.constant 0 : i32
    %c0_i32_0 = arith.constant 0 : i32
    %c0_i32_1 = arith.constant 0 : i32
    return %c0_i32, %c0_i32_0 : i32, i32
  }
  func.func @transform_5(%arg0: i32, %arg1: i32, %arg2: i32) -> (i32, i32) {
    %c0_i32 = arith.constant 0 : i32
    %c0_i32_0 = arith.constant 0 : i32
    %c0_i32_1 = arith.constant 0 : i32
    return %c0_i32, %c0_i32_0 : i32, i32
  }
  func.func @transform_6(%arg0: i32, %arg1: i32, %arg2: i32) -> (i32, i32) {
    %c0_i32 = arith.constant 0 : i32
    %c0_i32_0 = arith.constant 0 : i32
    %c0_i32_1 = arith.constant 0 : i32
    return %c0_i32, %c0_i32_0 : i32, i32
  }
  func.func @transform_7(%arg0: i32, %arg1: i32, %arg2: i32) -> (i32, i32) {
    %c0_i32 = arith.constant 0 : i32
    %c0_i32_0 = arith.constant 0 : i32
    %c0_i32_1 = arith.constant 0 : i32
    return %c0_i32, %c0_i32_0 : i32, i32
  }
  func.func @transform_8(%arg0: i32, %arg1: i32, %arg2: i32) -> (i32, i32) {
    %c0_i32 = arith.constant 0 : i32
    %c0_i32_0 = arith.constant 0 : i32
    %c0_i32_1 = arith.constant 0 : i32
    return %c0_i32, %c0_i32_0 : i32, i32
  }
  func.func @transform_9(%arg0: i32, %arg1: i32, %arg2: i32) -> (i32, i32) {
    %c0_i32 = arith.constant 0 : i32
    %c0_i32_0 = arith.constant 0 : i32
    %c0_i32_1 = arith.constant 0 : i32
    return %c0_i32, %c0_i32_0 : i32, i32
  }
  func.func @transform_10(%arg0: i32, %arg1: i32, %arg2: i32) -> (i32, i32, i32) {
    %c0_i32 = arith.constant 0 : i32
    %c0_i32_0 = arith.constant 0 : i32
    return %arg0, %c0_i32, %arg1 : i32, i32, i32
  }
}

</mosaic_0001>

<llo_original>
// kernel: tpu_custom_call.1
$region0: #{tpu_custom_call.1}
  #allocation0 [shape = 'u32[]', space=smem, size = 0x4, offset = 0x4, fixed_abs, tag = 'smem constant byte address 0x4 - core index']
  #allocation1 [shape = 'u32[144,128]{1,0:T(1,128)}', space=vmem, size = 0x12000, scoped, tag = 'internal scratch']
  #allocation2 [shape = 'f32[4,128]{1,0:T(4,128)}', space=vmem, size = 0x800, scoped, tag = 'scratch operand']
  #allocation3 [shape = 'f32[1,128]{1,0:T(1,128)}', space=vmem, size = 0x200, scoped, tag = 'scratch operand']
  #allocation4 [shape = 'f32[1,128]{1,0:T(1,128)}', space=vmem, size = 0x200, scoped, tag = 'scratch operand']
  #allocation5 [shape = 'f32[4,128]{1,0:T(4,128)}', space=vmem, size = 0x800, scoped, tag = 'scratch operand']
  %s0 = inlined_call_operand.vmem [shape: f32[2,16,128], index: 0, kind: input, shape index: {}]
  %s1 = inlined_call_operand.hbm [shape: f32[2,16,128], index: 1, kind: input, shape index: {}]
  %s2 = inlined_call_operand.vmem [shape: f32[4,16], index: 2, kind: input, shape index: {}]
  %s3 = inlined_call_operand.vmem [shape: f32[4,1], index: 3, kind: input, shape index: {}]
  %s4 = inlined_call_operand.vmem [shape: f32[4,16], index: 4, kind: input, shape index: {}]
  %s5 = inlined_call_operand.vmem [shape: f32[4,1], index: 5, kind: input, shape index: {}]
  %s6 = inlined_call_operand.vmem [shape: f32[4,16], index: 6, kind: input, shape index: {}]
  %s7 = inlined_call_operand.vmem [shape: f32[4,1], index: 7, kind: input, shape index: {}]
  %s8 = inlined_call_operand.vmem [shape: f32[16,4], index: 8, kind: input, shape index: {}]
  %s9 = inlined_call_operand.vmem [shape: f32[16,1], index: 9, kind: input, shape index: {}]
  %s10 = inlined_call_operand.hbm [shape: f32[2,16,128], index: 10, kind: output, shape index: {}]
  %s11 = sld [smem:[#allocation0]]
  $region85: #{tpu_custom_call.1} parent=0
    _
  %s13 = ssub.s32 1, %s11
  %s14 = scalar_select 0, %s13, %s11
  $region1: #{tpu_custom_call.1} parent=0
    #allocation6 [shape = 'u8[16384]{0}', space=vmem, size = 0x4000, scoped, tag = 'input window, operand 1']
    #allocation7 [shape = 's32[2]{0}', space=sflag, size = 0x8, scoped, tag = 'scoped memory for tpu_custom_call.1']
    #allocation8 [shape = 's32[2]{0}', space=sflag, size = 0x8, scoped, tag = 'scoped memory for tpu_custom_call.1']
    #allocation9 [shape = 'u8[16384]{0}', space=vmem, size = 0x4000, scoped, tag = 'output window, operand 0']
    %15 = vsyncpa [#allocation7], 0
    %s16 = scalar_lea.sflag [#allocation7], 1
    %17 = vsyncpa %s16, 0
    %18 = vsyncpa [#allocation8], 0
    %s19 = scalar_lea.sflag [#allocation8], 1
    %20 = vsyncpa %s19, 0
    loop: start=0, step=1, limit=4
    $region2: #{tpu_custom_call.1} parent=1 // loop_pre_header
      _
    $region3: #{tpu_custom_call.1} parent=1 // loop_header
      %s22 = sphi 0, %s26
      %p23 = scmp.ge.s32.totalorder %s22, 4
      %s29 = sphi 0, %s48
      %s30 = sphi 0, %s44
      %s31 = sphi 0, %s40
      %s32 = sphi 0, %s29
      %s33 = sphi 0, %s30
      %s34 = sphi 0, %s31
      %s35 = sphi 0, %s32
      %s36 = sphi 0, %s33
      %s37 = sphi 0, %s34
      %s53 = sphi 0, %s55
      %s56 = sphi 0, %s53
      %s57 = sphi 0, %s56
      %s73 = sphi 0, %s57
      %s81 = sphi 0, %s83
      %s84 = sphi 0, %s81
      %s85 = sphi 0, %s84
      %s101 = sphi 0, %s85
      %s105 = sphi 0, %s105
      %s107 = sphi 0, %s105
      %s108 = sphi 0, %s107
      %s122 = sphi 0, %s108
      %s126 = sphi 0, %s126
      %s128 = sphi 0, %s126
      %s129 = sphi 0, %s128
      %s143 = sphi 0, %s129
      %s147 = sphi 0, %s147
      %s149 = sphi 0, %s147
      %s150 = sphi 0, %s149
      %s164 = sphi 0, %s150
      %s168 = sphi 0, %s168
      %s170 = sphi 0, %s168
      %s171 = sphi 0, %s170
      %s185 = sphi 0, %s171
      %s189 = sphi 0, %s189
      %s191 = sphi 0, %s189
      %s192 = sphi 0, %s191
      %s206 = sphi 0, %s192
      %s210 = sphi 0, %s210
      %s212 = sphi 0, %s210
      %s213 = sphi 0, %s212
      %s227 = sphi 0, %s213
      %s231 = sphi 0, %s231
      %s233 = sphi 0, %s231
      %s234 = sphi 0, %s233
      %s248 = sphi 0, %s234
      %s252 = sphi 0, %s252
      %s254 = sphi 0, %s252
      %s255 = sphi 0, %s254
      %s269 = sphi 0, %s255
      %s277 = sphi 0, %s279
      %s280 = sphi 0, %s277
      %s281 = sphi 0, %s280
      %s297 = sphi 0, %s281
    $region4: #{tpu_custom_call.1} parent=1 // loop_header_branch
      %25 = sbr.rel (%p23) target = $region8
    $region5: #{tpu_custom_call.1} parent=1 // loop_body
      %s27 = ssub.s32 %s22, 1
      %s28 = ssub.s32 %s22, 2
      %s38 = sadd.s32 1, %s31
      %p39 = scmp.ge.s32.totalorder %s38, 1
      %s40 = scalar_select %p39, 0, %s38
      %s41 = sadd.s32 1, %s30
      %s42 = scalar_select %p39, %s41, %s30
      %p43 = scmp.ge.s32.totalorder %s42, 1
      %s44 = scalar_select %p43, 0, %s42
      %s45 = sadd.s32 1, %s29
      %s46 = scalar_select %p43, %s45, %s29
      %p47 = scmp.ge.s32.totalorder %s46, 2
      %s48 = scalar_select %p47, 0, %s46
      %s49 = ssub.s32 %s29, %s48
      %s50 = ssub.s32 %s30, %s44
      %s51 = sor.u32 %s49, %s50
      %p52 = scmp.eq.s32.totalorder %s51, 0
      %s54 = sadd.s32 %s53, 1
      %s55 = scalar_select %p52, %s53, %s54
      %p58 = pneg %p52
      %p59 = scmp.eq.s32.totalorder %s22, 1
      %p60 = por %p58, %p59
      %p61 = scmp.ne.s32.totalorder %s53, %s56
      %p62 = scmp.eq.s32.totalorder %s22, 0
      %p63 = por %p61, %p62
      %p64 = scmp.ne.s32.totalorder %s53, %s56
      %p65 = scmp.eq.s32.totalorder %s27, 1
      %p66 = por %p64, %p65
      %p67 = scmp.ne.s32.totalorder %s56, %s57
      %p68 = scmp.eq.s32.totalorder %s27, 0
      %p69 = por %p67, %p68
      %p70 = scmp.ne.s32.totalorder %s56, %s57
      %p71 = scmp.eq.s32.totalorder %s28, 1
      %p72 = por %p70, %p71
      %p74 = scmp.ne.s32.totalorder %s57, %s73
      %p75 = scmp.eq.s32.totalorder %s28, 0
      %p76 = por %p74, %p75
      %s77 = ssub.s32 %s29, %s48
      %s78 = ssub.s32 %s31, %s40
      %s79 = sor.u32 %s77, %s78
      %p80 = scmp.eq.s32.totalorder %s79, 0
      %s82 = sadd.s32 %s81, 1
      %s83 = scalar_select %p80, %s81, %s82
      %p86 = pneg %p80
      %p87 = scmp.eq.s32.totalorder %s22, 1
      %p88 = por %p86, %p87
      %p89 = scmp.ne.s32.totalorder %s81, %s84
      %p90 = scmp.eq.s32.totalorder %s22, 0
      %p91 = por %p89, %p90
      %p92 = scmp.ne.s32.totalorder %s81, %s84
      %p93 = scmp.eq.s32.totalorder %s27, 1
      %p94 = por %p92, %p93
      %p95 = scmp.ne.s32.totalorder %s84, %s85
      %p96 = scmp.eq.s32.totalorder %s27, 0
      %p97 = por %p95, %p96
      %p98 = scmp.ne.s32.totalorder %s84, %s85
      %p99 = scmp.eq.s32.totalorder %s28, 1
      %p100 = por %p98, %p99
      %p102 = scmp.ne.s32.totalorder %s85, %s101
      %p103 = scmp.eq.s32.totalorder %s28, 0
      %p104 = por %p102, %p103
      %s106 = sadd.s32 %s105, 1
      %p109 = scmp.eq.s32.totalorder %s22, 1
      %p110 = scmp.ne.s32.totalorder %s105, %s107
      %p111 = scmp.eq.s32.totalorder %s22, 0
      %p112 = por %p110, %p111
      %p113 = scmp.ne.s32.totalorder %s105, %s107
      %p114 = scmp.eq.s32.totalorder %s27, 1
      %p115 = por %p113, %p114
      %p116 = scmp.ne.s32.totalorder %s107, %s108
      %p117 = scmp.eq.s32.totalorder %s27, 0
      %p118 = por %p116, %p117
      %p119 = scmp.ne.s32.totalorder %s107, %s108
      %p120 = scmp.eq.s32.totalorder %s28, 1
      %p121 = por %p119, %p120
      %p123 = scmp.ne.s32.totalorder %s108, %s122
      %p124 = scmp.eq.s32.totalorder %s28, 0
      %p125 = por %p123, %p124
      %s127 = sadd.s32 %s126, 1
      %p130 = scmp.eq.s32.totalorder %s22, 1
      %p131 = scmp.ne.s32.totalorder %s126, %s128
      %p132 = scmp.eq.s32.totalorder %s22, 0
      %p133 = por %p131, %p132
      %p134 = scmp.ne.s32.totalorder %s126, %s128
      %p135 = scmp.eq.s32.totalorder %s27, 1
      %p136 = por %p134, %p135
      %p137 = scmp.ne.s32.totalorder %s128, %s129
      %p138 = scmp.eq.s32.totalorder %s27, 0
      %p139 = por %p137, %p138
      %p140 = scmp.ne.s32.totalorder %s128, %s129
      %p141 = scmp.eq.s32.totalorder %s28, 1
      %p142 = por %p140, %p141
      %p144 = scmp.ne.s32.totalorder %s129, %s143
      %p145 = scmp.eq.s32.totalorder %s28, 0
      %p146 = por %p144, %p145
      %s148 = sadd.s32 %s147, 1
      %p151 = scmp.eq.s32.totalorder %s22, 1
      %p152 = scmp.ne.s32.totalorder %s147, %s149
      %p153 = scmp.eq.s32.totalorder %s22, 0
      %p154 = por %p152, %p153
      %p155 = scmp.ne.s32.totalorder %s147, %s149
      %p156 = scmp.eq.s32.totalorder %s27, 1
      %p157 = por %p155, %p156
      %p158 = scmp.ne.s32.totalorder %s149, %s150
      %p159 = scmp.eq.s32.totalorder %s27, 0
      %p160 = por %p158, %p159
      %p161 = scmp.ne.s32.totalorder %s149, %s150
      %p162 = scmp.eq.s32.totalorder %s28, 1
      %p163 = por %p161, %p162
      %p165 = scmp.ne.s32.totalorder %s150, %s164
      %p166 = scmp.eq.s32.totalorder %s28, 0
      %p167 = por %p165, %p166
      %s169 = sadd.s32 %s168, 1
      %p172 = scmp.eq.s32.totalorder %s22, 1
      %p173 = scmp.ne.s32.totalorder %s168, %s170
      %p174 = scmp.eq.s32.totalorder %s22, 0
      %p175 = por %p173, %p174
      %p176 = scmp.ne.s32.totalorder %s168, %s170
      %p177 = scmp.eq.s32.totalorder %s27, 1
      %p178 = por %p176, %p177
      %p179 = scmp.ne.s32.totalorder %s170, %s171
      %p180 = scmp.eq.s32.totalorder %s27, 0
      %p181 = por %p179, %p180
      %p182 = scmp.ne.s32.totalorder %s170, %s171
      %p183 = scmp.eq.s32.totalorder %s28, 1
      %p184 = por %p182, %p183
      %p186 = scmp.ne.s32.totalorder %s171, %s185
      %p187 = scmp.eq.s32.totalorder %s28, 0
      %p188 = por %p186, %p187
      %s190 = sadd.s32 %s189, 1
      %p193 = scmp.eq.s32.totalorder %s22, 1
      %p194 = scmp.ne.s32.totalorder %s189, %s191
      %p195 = scmp.eq.s32.totalorder %s22, 0
      %p196 = por %p194, %p195
      %p197 = scmp.ne.s32.totalorder %s189, %s191
      %p198 = scmp.eq.s32.totalorder %s27, 1
      %p199 = por %p197, %p198
      %p200 = scmp.ne.s32.totalorder %s191, %s192
      %p201 = scmp.eq.s32.totalorder %s27, 0
      %p202 = por %p200, %p201
      %p203 = scmp.ne.s32.totalorder %s191, %s192
      %p204 = scmp.eq.s32.totalorder %s28, 1
      %p205 = por %p203, %p204
      %p207 = scmp.ne.s32.totalorder %s192, %s206
      %p208 = scmp.eq.s32.totalorder %s28, 0
      %p209 = por %p207, %p208
      %s211 = sadd.s32 %s210, 1
      %p214 = scmp.eq.s32.totalorder %s22, 1
      %p215 = scmp.ne.s32.totalorder %s210, %s212
      %p216 = scmp.eq.s32.totalorder %s22, 0
      %p217 = por %p215, %p216
      %p218 = scmp.ne.s32.totalorder %s210, %s212
      %p219 = scmp.eq.s32.totalorder %s27, 1
      %p220 = por %p218, %p219
      %p221 = scmp.ne.s32.totalorder %s212, %s213
      %p222 = scmp.eq.s32.totalorder %s27, 0
      %p223 = por %p221, %p222
      %p224 = scmp.ne.s32.totalorder %s212, %s213
      %p225 = scmp.eq.s32.totalorder %s28, 1
      %p226 = por %p224, %p225
      %p228 = scmp.ne.s32.totalorder %s213, %s227
      %p229 = scmp.eq.s32.totalorder %s28, 0
      %p230 = por %p228, %p229
      %s232 = sadd.s32 %s231, 1
      %p235 = scmp.eq.s32.totalorder %s22, 1
      %p236 = scmp.ne.s32.totalorder %s231, %s233
      %p237 = scmp.eq.s32.totalorder %s22, 0
      %p238 = por %p236, %p237
      %p239 = scmp.ne.s32.totalorder %s231, %s233
      %p240 = scmp.eq.s32.totalorder %s27, 1
      %p241 = por %p239, %p240
      %p242 = scmp.ne.s32.totalorder %s233, %s234
      %p243 = scmp.eq.s32.totalorder %s27, 0
      %p244 = por %p242, %p243
      %p245 = scmp.ne.s32.totalorder %s233, %s234
      %p246 = scmp.eq.s32.totalorder %s28, 1
      %p247 = por %p245, %p246
      %p249 = scmp.ne.s32.totalorder %s234, %s248
      %p250 = scmp.eq.s32.totalorder %s28, 0
      %p251 = por %p249, %p250
      %s253 = sadd.s32 %s252, 1
      %p256 = scmp.eq.s32.totalorder %s22, 1
      %p257 = scmp.ne.s32.totalorder %s252, %s254
      %p258 = scmp.eq.s32.totalorder %s22, 0
      %p259 = por %p257, %p258
      %p260 = scmp.ne.s32.totalorder %s252, %s254
      %p261 = scmp.eq.s32.totalorder %s27, 1
      %p262 = por %p260, %p261
      %p263 = scmp.ne.s32.totalorder %s254, %s255
      %p264 = scmp.eq.s32.totalorder %s27, 0
      %p265 = por %p263, %p264
      %p266 = scmp.ne.s32.totalorder %s254, %s255
      %p267 = scmp.eq.s32.totalorder %s28, 1
      %p268 = por %p266, %p267
      %p270 = scmp.ne.s32.totalorder %s255, %s269
      %p271 = scmp.eq.s32.totalorder %s28, 0
      %p272 = por %p270, %p271
      %s273 = ssub.s32 %s29, %s48
      %s274 = ssub.s32 %s30, %s44
      %s275 = sor.u32 %s273, %s274
      %p276 = scmp.eq.s32.totalorder %s275, 0
      %s278 = sadd.s32 %s277, 1
      %s279 = scalar_select %p276, %s277, %s278
      %p282 = pneg %p276
      %p283 = scmp.eq.s32.totalorder %s22, 1
      %p284 = por %p282, %p283
      %p285 = scmp.ne.s32.totalorder %s277, %s280
      %p286 = scmp.eq.s32.totalorder %s22, 0
      %p287 = por %p285, %p286
      %p288 = scmp.ne.s32.totalorder %s277, %s280
      %p289 = scmp.eq.s32.totalorder %s27, 1
      %p290 = por %p288, %p289
      %p291 = scmp.ne.s32.totalorder %s280, %s281
      %p292 = scmp.eq.s32.totalorder %s27, 0
      %p293 = por %p291, %p292
      %p294 = scmp.ne.s32.totalorder %s280, %s281
      %p295 = scmp.eq.s32.totalorder %s28, 1
      %p296 = por %p294, %p295
      %p298 = scmp.ne.s32.totalorder %s281, %s297
      %p299 = scmp.eq.s32.totalorder %s28, 0
      %p300 = por %p298, %p299
      %p301 = scmp.le.s32.totalorder 1, %s22
      %p302 = scmp.lt.s32.totalorder %s22, 3
      %p303 = pnand %p301, %p302
      %p304 = pneg %p303
      // Predicated region
      $region9: #{tpu_custom_call.1} parent=5 // pred_check
        _
      $region10: #{tpu_custom_call.1} parent=5 // pred_check_branch
        %306 = sbr.rel (%p303) target = $region12
      $region11: #{tpu_custom_call.1} parent=5 // pred_region
        %s307 = ssub.s32 %s22, 1
        // Predicated region
        $region13: #{tpu_custom_call.1} parent=11 // pred_check
          %p308 = pneg %p118
        $region14: #{tpu_custom_call.1} parent=11 // pred_check_branch
          %310 = sbr.rel (%p308) target = $region16
        $region15: #{tpu_custom_call.1} parent=11 // pred_region
          _
        $region16: #{tpu_custom_call.1} parent=11 // pred_fallthru
          _
        // Predicated region
        $region17: #{tpu_custom_call.1} parent=11 // pred_check
          %p311 = pneg %p139
        $region18: #{tpu_custom_call.1} parent=11 // pred_check_branch
          %313 = sbr.rel (%p311) target = $region20
        $region19: #{tpu_custom_call.1} parent=11 // pred_region
          _
        $region20: #{tpu_custom_call.1} parent=11 // pred_fallthru
          _
        // Predicated region
        $region21: #{tpu_custom_call.1} parent=11 // pred_check
          %p314 = pneg %p160
        $region22: #{tpu_custom_call.1} parent=11 // pred_check_branch
          %316 = sbr.rel (%p314) target = $region24
        $region23: #{tpu_custom_call.1} parent=11 // pred_region
          _
        $region24: #{tpu_custom_call.1} parent=11 // pred_fallthru
          _
        // Predicated region
        $region25: #{tpu_custom_call.1} parent=11 // pred_check
          %p317 = pneg %p181
        $region26: #{tpu_custom_call.1} parent=11 // pred_check_branch
          %319 = sbr.rel (%p317) target = $region28
        $region27: #{tpu_custom_call.1} parent=11 // pred_region
          _
        $region28: #{tpu_custom_call.1} parent=11 // pred_fallthru
          _
        // Predicated region
        $region29: #{tpu_custom_call.1} parent=11 // pred_check
          %p320 = pneg %p202
        $region30: #{tpu_custom_call.1} parent=11 // pred_check_branch
          %322 = sbr.rel (%p320) target = $region32
        $region31: #{tpu_custom_call.1} parent=11 // pred_region
          _
        $region32: #{tpu_custom_call.1} parent=11 // pred_fallthru
          _
        // Predicated region
        $region33: #{tpu_custom_call.1} parent=11 // pred_check
          %p323 = pneg %p223
        $region34: #{tpu_custom_call.1} parent=11 // pred_check_branch
          %325 = sbr.rel (%p323) target = $region36
        $region35: #{tpu_custom_call.1} parent=11 // pred_region
          _
        $region36: #{tpu_custom_call.1} parent=11 // pred_fallthru
          _
        // Predicated region
        $region37: #{tpu_custom_call.1} parent=11 // pred_check
          %p326 = pneg %p244
        $region38: #{tpu_custom_call.1} parent=11 // pred_check_branch
          %328 = sbr.rel (%p326) target = $region40
        $region39: #{tpu_custom_call.1} parent=11 // pred_region
          _
        $region40: #{tpu_custom_call.1} parent=11 // pred_fallthru
          _
        // Predicated region
        $region41: #{tpu_custom_call.1} parent=11 // pred_check
          %p329 = pneg %p265
        $region42: #{tpu_custom_call.1} parent=11 // pred_check_branch
          %331 = sbr.rel (%p329) target = $region44
        $region43: #{tpu_custom_call.1} parent=11 // pred_region
          _
        $region44: #{tpu_custom_call.1} parent=11 // pred_fallthru
          _
      $region12: #{tpu_custom_call.1} parent=5 // pred_fallthru
        _
      %p332 = scmp.lt.s32.totalorder %s22, 2
      // Predicated region
      $region45: #{tpu_custom_call.1} parent=5 // pred_check
        %p333 = pneg %p332
      $region46: #{tpu_custom_call.1} parent=5 // pred_check_branch
        %335 = sbr.rel (%p333) target = $region48
      $region47: #{tpu_custom_call.1} parent=5 // pred_region
        // Predicated region
        $region49: #{tpu_custom_call.1} parent=47 // pred_check
          %p336 = pneg %p63
        $region50: #{tpu_custom_call.1} parent=47 // pred_check_branch
          %338 = sbr.rel (%p336) target = $region52
        $region51: #{tpu_custom_call.1} parent=47 // pred_region
          %p339 = scmp.lt.s32.totalorder %s29, 1
          %s340 = scalar_select %p339, %s29, 1
          %p341 = scmp.lt.s32.totalorder %s30, 0
          %s342 = scalar_select %p341, %s30, 0
          %s343 = smul.addr %s340, 2
          %s344 = sadd.s32 %s342, %s343
          %s345 = smul.addr %s344, 8
          %s346 = scalar_lea.vmem %s0, %s345
        $region52: #{tpu_custom_call.1} parent=47 // pred_fallthru
          _
        // Predicated region
        $region53: #{tpu_custom_call.1} parent=47 // pred_check
          %p347 = pneg %p91
        $region54: #{tpu_custom_call.1} parent=47 // pred_check_branch
          %349 = sbr.rel (%p347) target = $region56
        $region55: #{tpu_custom_call.1} parent=47 // pred_region
          %s350 = sand.u32 %s81, 1
          %s351 = scalar_lea.sflag [#allocation7], %s350
          %s352 = sand.u32 %s81, 1
          %s353 = smul.addr %s352, 16
          %s354 = scalar_lea.vmem [#allocation6], %s353
          %s356 = ssub.s32 256, 256
          %357 = vsyncadd %s351, %s356
          %s358 = smul.addr %s29, 2
          %s359 = sadd.s32 %s31, %s358
          %s360 = smul.addr %s359, 128
          %s361 = scalar_lea.hbm %s1, %s360
          %s362 = sshll.u32 %s354, 4
          %s363 = int_to_ptr.vmem [resolvable:$true] %s362
          %368 = dma.hbm_to_vmem [thread:$0]  %s361, 256, %s363, %s351, 128, 128, 8
        $region56: #{tpu_custom_call.1} parent=47 // pred_fallthru
          _
      $region48: #{tpu_custom_call.1} parent=5 // pred_fallthru
        _
      %p369 = scmp.le.s32.totalorder 1, %s22
      %p370 = scmp.lt.s32.totalorder %s22, 3
      %p371 = pnand %p369, %p370
      %p372 = pneg %p371
      // Predicated region
      $region57: #{tpu_custom_call.1} parent=5 // pred_check
        _
      $region58: #{tpu_custom_call.1} parent=5 // pred_check_branch
        %374 = sbr.rel (%p371) target = $region60
      $region59: #{tpu_custom_call.1} parent=5 // pred_region
        %s375 = ssub.s32 %s22, 1
        %s376 = sand.u32 %s84, 1
        %s377 = scalar_lea.sflag [#allocation7], %s376
        %s378 = sand.u32 %s84, 1
        %s379 = smul.addr %s378, 16
        %s380 = scalar_lea.vmem [#allocation6], %s379
        // Predicated region
        $region61: #{tpu_custom_call.1} parent=59 // pred_check
          %p381 = pneg %p97
        $region62: #{tpu_custom_call.1} parent=59 // pred_check_branch
          %383 = sbr.rel (%p381) target = $region64
        $region63: #{tpu_custom_call.1} parent=59 // pred_region
          %384 = dma.done %s377, 256
        $region64: #{tpu_custom_call.1} parent=59 // pred_fallthru
          _
        %p385 = scmp.lt.s32.totalorder %s32, 1
        %s386 = scalar_select %p385, %s32, 1
        %p387 = scmp.lt.s32.totalorder %s33, 0
        %s388 = scalar_select %p387, %s33, 0
        %s389 = smul.addr %s386, 2
        %s390 = sadd.s32 %s388, %s389
        %s391 = smul.addr %s390, 8
        %s392 = scalar_lea.vmem %s0, %s391
        %p393 = pneg %p69
        %p394 = pneg %p66
        %s395 = sand.u32 %s84, 1
        %s396 = scalar_lea.sflag [#allocation7], %s395
        %s397 = sand.u32 %s84, 1
        %s398 = smul.addr %s397, 16
        %s399 = scalar_lea.vmem [#allocation6], %s398
        %p400 = pneg %p97
        %p401 = pneg %p94
        %p402 = pneg %p118
        %p403 = pneg %p115
        %p404 = pneg %p139
        %p405 = pneg %p136
        %p406 = pneg %p160
        %p407 = pneg %p157
        %p408 = pneg %p181
        %p409 = pneg %p178
        %p410 = pneg %p202
        %p411 = pneg %p199
        %p412 = pneg %p223
        %p413 = pneg %p220
        %p414 = pneg %p244
        %p415 = pneg %p241
        %p416 = pneg %p265
        %p417 = pneg %p262
        %p418 = pneg %p293
        %p419 = pneg %p290
        %s420 = sand.u32 %s280, 1
        %s421 = scalar_lea.sflag [#allocation8], %s420
        %s422 = sand.u32 %s280, 1
        %s423 = smul.addr %s422, 16
        %s424 = scalar_lea.vmem [#allocation9], %s423
        %p425 = scmp.lt.s32.totalorder %s32, 1
        %s426 = scalar_select %p425, %s32, 1
        %p427 = scmp.lt.s32.totalorder %s33, 0
        %s428 = scalar_select %p427, %s33, 0
        %s429 = smul.addr %s426, 2
        %s430 = sadd.s32 %s428, %s429
        %s431 = smul.addr %s430, 8
        %s432 = scalar_lea.vmem %s0, %s431
        %p433 = scmp.eq.s32.totalorder %s34, 0
        // Predicated region
        $region65: #{tpu_custom_call.1} parent=59 // pred_check
          %p434 = pneg %p433
        $region66: #{tpu_custom_call.1} parent=59 // pred_check_branch
          %436 = sbr.rel (%p434) target = $region68
        $region67: #{tpu_custom_call.1} parent=59 // pred_region
          %v437 = vld [vmem:[%s2] sm:$0xf]
          %v438 = vld [vmem:[%s432] sm:$0xff]
          %v439 = vld [vmem:[%s432 + $0x8] sm:$0xff]
          %v440 = vld [vmem:[%s3] sm:$0xf]
          %442 = vset.pattern.permute.xlu0 0
          %443 = vperm.xlu0 %442, %v440
          %v444 = vpop.permute.xlu0 %443
          %vm446 = vcmask 130048
          %v448 = vsel %vm446, %v437, 0
          %450 = vmatprep.subr.mxu0 0.0
          %451 = vmatpush1.msra.mxu0 %v438
          %452 = vmatprep.subr.mxu0 0.0
          %453 = vmatpush1.msra.mxu0 %v439
          %454 = vmatprep.subr.mxu0 0.0
          %455 = vmatpush1.msra.mxu0 0.0
          %456 = vmatprep.subr.mxu0 0.0
          %457 = vmatpush1.msra.mxu0 0.0
          %458 = vmatprep.subr.mxu0 0.0
          %459 = vmatpush1.msra.mxu0 0.0
          %460 = vmatprep.subr.mxu0 0.0
          %461 = vmatpush1.msra.mxu0 0.0
          %462 = vmatprep.subr.mxu0 0.0
          %463 = vmatpush1.msra.mxu0 0.0
          %464 = vmatprep.subr.mxu0 0.0
          %465 = vmatpush1.msra.mxu0 0.0
          %466 = vmatprep.subr.mxu0 0.0
          %467 = vmatpush1.msra.mxu0 0.0
          %468 = vmatprep.subr.mxu0 0.0
          %469 = vmatpush1.msra.mxu0 0.0
          %470 = vmatprep.subr.mxu0 0.0
          %471 = vmatpush1.msra.mxu0 0.0
          %472 = vmatprep.subr.mxu0 0.0
          %473 = vmatpush1.msra.mxu0 0.0
          %474 = vmatprep.subr.mxu0 0.0
          %475 = vmatpush1.msra.mxu0 0.0
          %476 = vmatprep.subr.mxu0 0.0
          %477 = vmatpush1.msra.mxu0 0.0
          %478 = vmatprep.subr.mxu0 0.0
          %479 = vmatpush1.msra.mxu0 0.0
          %480 = vmatprep.subr.mxu0 0.0
          %481 = vmatpush1.msra.mxu0 0.0
          %482 = vmatprep.subr.mxu0 0.0
          %483 = vmatpush1.msra.mxu0 0.0
          %484 = vmatprep.subr.mxu0 0.0
          %485 = vmatpush1.msra.mxu0 0.0
          %486 = vmatprep.subr.mxu0 0.0
          %487 = vmatpush1.msra.mxu0 0.0
          %488 = vmatprep.subr.mxu0 0.0
          %489 = vmatpush1.msra.mxu0 0.0
          %490 = vmatprep.subr.mxu0 0.0
          %491 = vmatpush1.msra.mxu0 0.0
          %492 = vmatprep.subr.mxu0 0.0
          %493 = vmatpush1.msra.mxu0 0.0
          %494 = vmatprep.subr.mxu0 0.0
          %495 = vmatpush1.msra.mxu0 0.0
          %496 = vmatprep.subr.mxu0 0.0
          %497 = vmatpush1.msra.mxu0 0.0
          %498 = vmatprep.subr.mxu0 0.0
          %499 = vmatpush1.msra.mxu0 0.0
          %500 = vmatprep.subr.mxu0 0.0
          %501 = vmatpush1.msra.mxu0 0.0
          %502 = vmatprep.subr.mxu0 0.0
          %503 = vmatpush1.msra.mxu0 0.0
          %504 = vmatprep.subr.mxu0 0.0
          %505 = vmatpush1.msra.mxu0 0.0
          %506 = vmatprep.subr.mxu0 0.0
          %507 = vmatpush1.msra.mxu0 0.0
          %508 = vmatprep.subr.mxu0 0.0
          %509 = vmatpush1.msra.mxu0 0.0
          %510 = vmatprep.subr.mxu0 0.0
          %511 = vmatpush1.msra.mxu0 0.0
          %512 = vmatprep.subr.mxu0 0.0
          %513 = vmatpush1.msra.mxu0 0.0
          %514 = vmatprep.mubr.f32.mxu0 0.0
          %515 = vmatmul.mubr.f32.gmra.mrb[0].mxu0 %v448
          %v516 = vpop.f32.mrb[0].mxu0
          %v517 = vadd.f32 %v444, %v516
          %v518 = vpop.f32.mrb[0].mxu0
          %519 = vdwg.mxu0
          %520 = vst [vmem:[#allocation2] sm:$0xf] %v517
          %521 = vst [vmem:[#allocation3] sm:$0x1] -inf
          %522 = vst [vmem:[#allocation4] sm:$0x1] 0.0
          %523 = vst [vmem:[#allocation5] sm:$0xf] 0.0
        $region68: #{tpu_custom_call.1} parent=59 // pred_fallthru
          _
        %v524 = vld [vmem:[%s380] sm:$0xff]
        %v525 = vld [vmem:[%s380 + $0x8] sm:$0xff]
        %v526 = vld [vmem:[%s4] sm:$0xf]
        %v527 = vld [vmem:[%s5] sm:$0xf]
        %529 = vset.pattern.permute.xlu0 0
        %530 = vperm.xlu0 %529, %v527
        %v531 = vpop.permute.xlu0 %530
        %vm533 = vcmask 130048
        %v535 = vsel %vm533, %v526, 0
        %537 = vmatprep.subr.mxu0 0.0
        %538 = vmatpush1.msra.mxu0 %v524
        %539 = vmatprep.subr.mxu0 0.0
        %540 = vmatpush1.msra.mxu0 %v525
        %541 = vmatprep.subr.mxu0 0.0
        %542 = vmatpush1.msra.mxu0 0.0
        %543 = vmatprep.subr.mxu0 0.0
        %544 = vmatpush1.msra.mxu0 0.0
        %545 = vmatprep.subr.mxu0 0.0
        %546 = vmatpush1.msra.mxu0 0.0
        %547 = vmatprep.subr.mxu0 0.0
        %548 = vmatpush1.msra.mxu0 0.0
        %549 = vmatprep.subr.mxu0 0.0
        %550 = vmatpush1.msra.mxu0 0.0
        %551 = vmatprep.subr.mxu0 0.0
        %552 = vmatpush1.msra.mxu0 0.0
        %553 = vmatprep.subr.mxu0 0.0
        %554 = vmatpush1.msra.mxu0 0.0
        %555 = vmatprep.subr.mxu0 0.0
        %556 = vmatpush1.msra.mxu0 0.0
        %557 = vmatprep.subr.mxu0 0.0
        %558 = vmatpush1.msra.mxu0 0.0
        %559 = vmatprep.subr.mxu0 0.0
        %560 = vmatpush1.msra.mxu0 0.0
        %561 = vmatprep.subr.mxu0 0.0
        %562 = vmatpush1.msra.mxu0 0.0
        %563 = vmatprep.subr.mxu0 0.0
        %564 = vmatpush1.msra.mxu0 0.0
        %565 = vmatprep.subr.mxu0 0.0
        %566 = vmatpush1.msra.mxu0 0.0
        %567 = vmatprep.subr.mxu0 0.0
        %568 = vmatpush1.msra.mxu0 0.0
        %569 = vmatprep.subr.mxu0 0.0
        %570 = vmatpush1.msra.mxu0 0.0
        %571 = vmatprep.subr.mxu0 0.0
        %572 = vmatpush1.msra.mxu0 0.0
        %573 = vmatprep.subr.mxu0 0.0
        %574 = vmatpush1.msra.mxu0 0.0
        %575 = vmatprep.subr.mxu0 0.0
        %576 = vmatpush1.msra.mxu0 0.0
        %577 = vmatprep.subr.mxu0 0.0
        %578 = vmatpush1.msra.mxu0 0.0
        %579 = vmatprep.subr.mxu0 0.0
        %580 = vmatpush1.msra.mxu0 0.0
        %581 = vmatprep.subr.mxu0 0.0
        %582 = vmatpush1.msra.mxu0 0.0
        %583 = vmatprep.subr.mxu0 0.0
        %584 = vmatpush1.msra.mxu0 0.0
        %585 = vmatprep.subr.mxu0 0.0
        %586 = vmatpush1.msra.mxu0 0.0
        %587 = vmatprep.subr.mxu0 0.0
        %588 = vmatpush1.msra.mxu0 0.0
        %589 = vmatprep.subr.mxu0 0.0
        %590 = vmatpush1.msra.mxu0 0.0
        %591 = vmatprep.subr.mxu0 0.0
        %592 = vmatpush1.msra.mxu0 0.0
        %593 = vmatprep.subr.mxu0 0.0
        %594 = vmatpush1.msra.mxu0 0.0
        %595 = vmatprep.subr.mxu0 0.0
        %596 = vmatpush1.msra.mxu0 0.0
        %597 = vmatprep.subr.mxu0 0.0
        %598 = vmatpush1.msra.mxu0 0.0
        %599 = vmatprep.subr.mxu0 0.0
        %600 = vmatpush1.msra.mxu0 0.0
        %601 = vmatprep.mubr.f32.mxu0 0.0
        %602 = vmatmul.mubr.f32.gmra.mrb[0].mxu0 %v535
        %v603 = vpop.f32.mrb[0].mxu0
        %v604 = vadd.f32 %v531, %v603
        %v605 = vpop.f32.mrb[0].mxu0
        %606 = vdwg.mxu0
        %v607 = vld [vmem:[%s6] sm:$0xf]
        %v608 = vld [vmem:[%s7] sm:$0xf]
        %610 = vset.pattern.permute.xlu0 0
        %611 = vperm.xlu0 %610, %v608
        %v612 = vpop.permute.xlu0 %611
        %v615 = vsel %vm533, %v607, 0
        %617 = vmatprep.subr.mxu0 0.0
        %618 = vmatpush1.msra.mxu0 %v524
        %619 = vmatprep.subr.mxu0 0.0
        %620 = vmatpush1.msra.mxu0 %v525
        %621 = vmatprep.subr.mxu0 0.0
        %622 = vmatpush1.msra.mxu0 0.0
        %623 = vmatprep.subr.mxu0 0.0
        %624 = vmatpush1.msra.mxu0 0.0
        %625 = vmatprep.subr.mxu0 0.0
        %626 = vmatpush1.msra.mxu0 0.0
        %627 = vmatprep.subr.mxu0 0.0
        %628 = vmatpush1.msra.mxu0 0.0
        %629 = vmatprep.subr.mxu0 0.0
        %630 = vmatpush1.msra.mxu0 0.0
        %631 = vmatprep.subr.mxu0 0.0
        %632 = vmatpush1.msra.mxu0 0.0
        %633 = vmatprep.subr.mxu0 0.0
        %634 = vmatpush1.msra.mxu0 0.0
        %635 = vmatprep.subr.mxu0 0.0
        %636 = vmatpush1.msra.mxu0 0.0
        %637 = vmatprep.subr.mxu0 0.0
        %638 = vmatpush1.msra.mxu0 0.0
        %639 = vmatprep.subr.mxu0 0.0
        %640 = vmatpush1.msra.mxu0 0.0
        %641 = vmatprep.subr.mxu0 0.0
        %642 = vmatpush1.msra.mxu0 0.0
        %643 = vmatprep.subr.mxu0 0.0
        %644 = vmatpush1.msra.mxu0 0.0
        %645 = vmatprep.subr.mxu0 0.0
        %646 = vmatpush1.msra.mxu0 0.0
        %647 = vmatprep.subr.mxu0 0.0
        %648 = vmatpush1.msra.mxu0 0.0
        %649 = vmatprep.subr.mxu0 0.0
        %650 = vmatpush1.msra.mxu0 0.0
        %651 = vmatprep.subr.mxu0 0.0
        %652 = vmatpush1.msra.mxu0 0.0
        %653 = vmatprep.subr.mxu0 0.0
        %654 = vmatpush1.msra.mxu0 0.0
        %655 = vmatprep.subr.mxu0 0.0
        %656 = vmatpush1.msra.mxu0 0.0
        %657 = vmatprep.subr.mxu0 0.0
        %658 = vmatpush1.msra.mxu0 0.0
        %659 = vmatprep.subr.mxu0 0.0
        %660 = vmatpush1.msra.mxu0 0.0
        %661 = vmatprep.subr.mxu0 0.0
        %662 = vmatpush1.msra.mxu0 0.0
        %663 = vmatprep.subr.mxu0 0.0
        %664 = vmatpush1.msra.mxu0 0.0
        %665 = vmatprep.subr.mxu0 0.0
        %666 = vmatpush1.msra.mxu0 0.0
        %667 = vmatprep.subr.mxu0 0.0
        %668 = vmatpush1.msra.mxu0 0.0
        %669 = vmatprep.subr.mxu0 0.0
        %670 = vmatpush1.msra.mxu0 0.0
        %671 = vmatprep.subr.mxu0 0.0
        %672 = vmatpush1.msra.mxu0 0.0
        %673 = vmatprep.subr.mxu0 0.0
        %674 = vmatpush1.msra.mxu0 0.0
        %675 = vmatprep.subr.mxu0 0.0
        %676 = vmatpush1.msra.mxu0 0.0
        %677 = vmatprep.subr.mxu0 0.0
        %678 = vmatpush1.msra.mxu0 0.0
        %679 = vmatprep.subr.mxu0 0.0
        %680 = vmatpush1.msra.mxu0 0.0
        %681 = vmatprep.mubr.f32.mxu0 0.0
        %682 = vmatmul.mubr.f32.gmra.mrb[0].mxu0 %v615
        %v683 = vpop.f32.mrb[0].mxu0
        %v684 = vadd.f32 %v612, %v683
        %v685 = vpop.f32.mrb[0].mxu0
        %686 = vdwg.mxu0
        %687 = vxpose.xlu0.b32.start [1/16] %v604, 128
        %688 = vxpose.xlu0.b32.cont [2/16] 0.0, 128
        %689 = vxpose.xlu0.b32.cont [3/16] 0.0, 128
        %690 = vxpose.xlu0.b32.cont [4/16] 0.0, 128
        %691 = vxpose.xlu0.b32.cont [5/16] 0.0, 128
        %692 = vxpose.xlu0.b32.cont [6/16] 0.0, 128
        %693 = vxpose.xlu0.b32.cont [7/16] 0.0, 128
        %694 = vxpose.xlu0.b32.cont [8/16] 0.0, 128
        %695 = vxpose.xlu0.b32.cont [9/16] 0.0, 128
        %696 = vxpose.xlu0.b32.cont [10/16] 0.0, 128
        %697 = vxpose.xlu0.b32.cont [11/16] 0.0, 128
        %698 = vxpose.xlu0.b32.cont [12/16] 0.0, 128
        %699 = vxpose.xlu0.b32.cont [13/16] 0.0, 128
        %700 = vxpose.xlu0.b32.cont [14/16] 0.0, 128
        %701 = vxpose.xlu0.b32.cont [15/16] 0.0, 128
        %702 = vxpose.xlu0.b32.end [16/16] 0.0, 128
        %v703 = vpop.trf.xlu0
        %v704 = vpop.trf.xlu0
        %v705 = vpop.trf.xlu0
        %v706 = vpop.trf.xlu0
        %v707 = vpop.trf.xlu0
        %v708 = vpop.trf.xlu0
        %v709 = vpop.trf.xlu0
        %v710 = vpop.trf.xlu0
        %v711 = vpop.trf.xlu0
        %v712 = vpop.trf.xlu0
        %v713 = vpop.trf.xlu0
        %v714 = vpop.trf.xlu0
        %v715 = vpop.trf.xlu0
        %v716 = vpop.trf.xlu0
        %v717 = vpop.trf.xlu0
        %v718 = vpop.trf.xlu0
        %v719 = vld [vmem:[#allocation2] sm:$0xf]
        %vm720 = vcmask 31744
        %v722 = vsel %vm720, %v703, 0
        %v725 = vsel %vm720, %v704, 0
        %v728 = vsel %vm720, %v705, 0
        %v731 = vsel %vm720, %v706, 0
        %v734 = vsel %vm720, %v707, 0
        %v737 = vsel %vm720, %v708, 0
        %v740 = vsel %vm720, %v709, 0
        %v743 = vsel %vm720, %v710, 0
        %v746 = vsel %vm720, %v711, 0
        %v749 = vsel %vm720, %v712, 0
        %v752 = vsel %vm720, %v713, 0
        %v755 = vsel %vm720, %v714, 0
        %v758 = vsel %vm720, %v715, 0
        %v761 = vsel %vm720, %v716, 0
        %v764 = vsel %vm720, %v717, 0
        %v767 = vsel %vm720, %v718, 0
        %vm769 = vcmask 1043456
        %v771 = vsel %vm769, %v719, 0
        %773 = vmatprep.subr.mxu0 0.0
        %774 = vmatpush1.msra.mxu0 %v771
        %775 = vmatprep.subr.mxu0 0.0
        %776 = vmatpush1.msra.mxu0 0.0
        %777 = vmatprep.subr.mxu0 0.0
        %778 = vmatpush1.msra.mxu0 0.0
        %779 = vmatprep.subr.mxu0 0.0
        %780 = vmatpush1.msra.mxu0 0.0
        %781 = vmatprep.subr.mxu0 0.0
        %782 = vmatpush1.msra.mxu0 0.0
        %783 = vmatprep.subr.mxu0 0.0
        %784 = vmatpush1.msra.mxu0 0.0
        %785 = vmatprep.subr.mxu0 0.0
        %786 = vmatpush1.msra.mxu0 0.0
        %787 = vmatprep.subr.mxu0 0.0
        %788 = vmatpush1.msra.mxu0 0.0
        %789 = vmatprep.subr.mxu0 0.0
        %790 = vmatpush1.msra.mxu0 0.0
        %791 = vmatprep.subr.mxu0 0.0
        %792 = vmatpush1.msra.mxu0 0.0
        %793 = vmatprep.subr.mxu0 0.0
        %794 = vmatpush1.msra.mxu0 0.0
        %795 = vmatprep.subr.mxu0 0.0
        %796 = vmatpush1.msra.mxu0 0.0
        %797 = vmatprep.subr.mxu0 0.0
        %798 = vmatpush1.msra.mxu0 0.0
        %799 = vmatprep.subr.mxu0 0.0
        %800 = vmatpush1.msra.mxu0 0.0
        %801 = vmatprep.subr.mxu0 0.0
        %802 = vmatpush1.msra.mxu0 0.0
        %803 = vmatprep.subr.mxu0 0.0
        %804 = vmatpush1.msra.mxu0 0.0
        %805 = vmatprep.subr.mxu0 0.0
        %806 = vmatpush1.msra.mxu0 0.0
        %807 = vmatprep.subr.mxu0 0.0
        %808 = vmatpush1.msra.mxu0 0.0
        %809 = vmatprep.subr.mxu0 0.0
        %810 = vmatpush1.msra.mxu0 0.0
        %811 = vmatprep.subr.mxu0 0.0
        %812 = vmatpush1.msra.mxu0 0.0
        %813 = vmatprep.subr.mxu0 0.0
        %814 = vmatpush1.msra.mxu0 0.0
        %815 = vmatprep.subr.mxu0 0.0
        %816 = vmatpush1.msra.mxu0 0.0
        %817 = vmatprep.subr.mxu0 0.0
        %818 = vmatpush1.msra.mxu0 0.0
        %819 = vmatprep.subr.mxu0 0.0
        %820 = vmatpush1.msra.mxu0 0.0
        %821 = vmatprep.subr.mxu0 0.0
        %822 = vmatpush1.msra.mxu0 0.0
        %823 = vmatprep.subr.mxu0 0.0
        %824 = vmatpush1.msra.mxu0 0.0
        %825 = vmatprep.subr.mxu0 0.0
        %826 = vmatpush1.msra.mxu0 0.0
        %827 = vmatprep.subr.mxu0 0.0
        %828 = vmatpush1.msra.mxu0 0.0
        %829 = vmatprep.subr.mxu0 0.0
        %830 = vmatpush1.msra.mxu0 0.0
        %831 = vmatprep.subr.mxu0 0.0
        %832 = vmatpush1.msra.mxu0 0.0
        %833 = vmatprep.subr.mxu0 0.0
        %834 = vmatpush1.msra.mxu0 0.0
        %835 = vmatprep.subr.mxu0 0.0
        %836 = vmatpush1.msra.mxu0 0.0
        %837 = vmatprep.mubr.f32.mxu0 0.0
        %838 = vmatmul.mubr.f32.gmra.mrb[0].mxu0 %v722
        %v839 = vpop.f32.mrb[0].mxu0
        %v840 = vadd.f32 0.0, %v839
        %v841 = vpop.f32.mrb[0].mxu0
        %842 = vmatprep.mubr.f32.mxu0 0.0
        %843 = vmatmul.mubr.f32.gmra.mrb[0].mxu0 %v725
        %v844 = vpop.f32.mrb[0].mxu0
        %v845 = vadd.f32 0.0, %v844
        %v846 = vpop.f32.mrb[0].mxu0
        %847 = vmatprep.mubr.f32.mxu0 0.0
        %848 = vmatmul.mubr.f32.gmra.mrb[0].mxu0 %v728
        %v849 = vpop.f32.mrb[0].mxu0
        %v850 = vadd.f32 0.0, %v849
        %v851 = vpop.f32.mrb[0].mxu0
        %852 = vmatprep.mubr.f32.mxu0 0.0
        %853 = vmatmul.mubr.f32.gmra.mrb[0].mxu0 %v731
        %v854 = vpop.f32.mrb[0].mxu0
        %v855 = vadd.f32 0.0, %v854
        %v856 = vpop.f32.mrb[0].mxu0
        %857 = vmatprep.mubr.f32.mxu0 0.0
        %858 = vmatmul.mubr.f32.gmra.mrb[0].mxu0 %v734
        %v859 = vpop.f32.mrb[0].mxu0
        %v860 = vadd.f32 0.0, %v859
        %v861 = vpop.f32.mrb[0].mxu0
        %862 = vmatprep.mubr.f32.mxu0 0.0
        %863 = vmatmul.mubr.f32.gmra.mrb[0].mxu0 %v737
        %v864 = vpop.f32.mrb[0].mxu0
        %v865 = vadd.f32 0.0, %v864
        %v866 = vpop.f32.mrb[0].mxu0
        %867 = vmatprep.mubr.f32.mxu0 0.0
        %868 = vmatmul.mubr.f32.gmra.mrb[0].mxu0 %v740
        %v869 = vpop.f32.mrb[0].mxu0
        %v870 = vadd.f32 0.0, %v869
        %v871 = vpop.f32.mrb[0].mxu0
        %872 = vmatprep.mubr.f32.mxu0 0.0
        %873 = vmatmul.mubr.f32.gmra.mrb[0].mxu0 %v743
        %v874 = vpop.f32.mrb[0].mxu0
        %v875 = vadd.f32 0.0, %v874
        %v876 = vpop.f32.mrb[0].mxu0
        %877 = vmatprep.mubr.f32.mxu0 0.0
        %878 = vmatmul.mubr.f32.gmra.mrb[0].mxu0 %v746
        %v879 = vpop.f32.mrb[0].mxu0
        %v880 = vadd.f32 0.0, %v879
        %v881 = vpop.f32.mrb[0].mxu0
        %882 = vmatprep.mubr.f32.mxu0 0.0
        %883 = vmatmul.mubr.f32.gmra.mrb[0].mxu0 %v749
        %v884 = vpop.f32.mrb[0].mxu0
        %v885 = vadd.f32 0.0, %v884
        %v886 = vpop.f32.mrb[0].mxu0
        %887 = vmatprep.mubr.f32.mxu0 0.0
        %888 = vmatmul.mubr.f32.gmra.mrb[0].mxu0 %v752
        %v889 = vpop.f32.mrb[0].mxu0
        %v890 = vadd.f32 0.0, %v889
        %v891 = vpop.f32.mrb[0].mxu0
        %892 = vmatprep.mubr.f32.mxu0 0.0
        %893 = vmatmul.mubr.f32.gmra.mrb[0].mxu0 %v755
        %v894 = vpop.f32.mrb[0].mxu0
        %v895 = vadd.f32 0.0, %v894
        %v896 = vpop.f32.mrb[0].mxu0
        %897 = vmatprep.mubr.f32.mxu0 0.0
        %898 = vmatmul.mubr.f32.gmra.mrb[0].mxu0 %v758
        %v899 = vpop.f32.mrb[0].mxu0
        %v900 = vadd.f32 0.0, %v899
        %v901 = vpop.f32.mrb[0].mxu0
        %902 = vmatprep.mubr.f32.mxu0 0.0
        %903 = vmatmul.mubr.f32.gmra.mrb[0].mxu0 %v761
        %v904 = vpop.f32.mrb[0].mxu0
        %v905 = vadd.f32 0.0, %v904
        %v906 = vpop.f32.mrb[0].mxu0
        %907 = vmatprep.mubr.f32.mxu0 0.0
        %908 = vmatmul.mubr.f32.gmra.mrb[0].mxu0 %v764
        %v909 = vpop.f32.mrb[0].mxu0
        %v910 = vadd.f32 0.0, %v909
        %v911 = vpop.f32.mrb[0].mxu0
        %912 = vmatprep.mubr.f32.mxu0 0.0
        %913 = vmatmul.mubr.f32.gmra.mrb[0].mxu0 %v767
        %v914 = vpop.f32.mrb[0].mxu0
        %v915 = vadd.f32 0.0, %v914
        %v916 = vpop.f32.mrb[0].mxu0
        %917 = vdwg.mxu0
        %s918 = smul.u32 %s34, 128
        %v919 = vlaneseq
        %v920 = vshrl.u32 %v919, 7
        %v921 = vadd.s32 %v920, 8
        %v922 = vadd.s32 %v920, 16
        %v923 = vadd.s32 %v920, 24
        %v924 = vadd.s32 %v920, 32
        %v925 = vadd.s32 %v920, 40
        %v926 = vadd.s32 %v920, 48
        %v927 = vadd.s32 %v920, 56
        %v928 = vadd.s32 %v920, 64
        %v929 = vadd.s32 %v920, 72
        %v930 = vadd.s32 %v920, 80
        %v931 = vadd.s32 %v920, 88
        %v932 = vadd.s32 %v920, 96
        %v933 = vadd.s32 %v920, 104
        %v934 = vadd.s32 %v920, 112
        %v935 = vadd.s32 %v920, 120
        %v936 = vstv %s918
        %v937 = vadd.s32 %v936, %v920
        %v938 = vadd.s32 %v936, %v921
        %v939 = vadd.s32 %v936, %v922
        %v940 = vadd.s32 %v936, %v923
        %v941 = vadd.s32 %v936, %v924
        %v942 = vadd.s32 %v936, %v925
        %v943 = vadd.s32 %v936, %v926
        %v944 = vadd.s32 %v936, %v927
        %v945 = vadd.s32 %v936, %v928
        %v946 = vadd.s32 %v936, %v929
        %v947 = vadd.s32 %v936, %v930
        %v948 = vadd.s32 %v936, %v931
        %v949 = vadd.s32 %v936, %v932
        %v950 = vadd.s32 %v936, %v933
        %v951 = vadd.s32 %v936, %v934
        %v952 = vadd.s32 %v936, %v935
        %vm953 = vcmp.lt.s32.totalorder %v937, 64
        %vm954 = vcmp.lt.s32.totalorder %v938, 64
        %vm955 = vcmp.lt.s32.totalorder %v939, 64
        %vm956 = vcmp.lt.s32.totalorder %v940, 64
        %vm957 = vcmp.lt.s32.totalorder %v941, 64
        %vm958 = vcmp.lt.s32.totalorder %v942, 64
        %vm959 = vcmp.lt.s32.totalorder %v943, 64
        %vm960 = vcmp.lt.s32.totalorder %v944, 64
        %vm961 = vcmp.lt.s32.totalorder %v945, 64
        %vm962 = vcmp.lt.s32.totalorder %v946, 64
        %vm963 = vcmp.lt.s32.totalorder %v947, 64
        %vm964 = vcmp.lt.s32.totalorder %v948, 64
        %vm965 = vcmp.lt.s32.totalorder %v949, 64
        %vm966 = vcmp.lt.s32.totalorder %v950, 64
        %vm967 = vcmp.lt.s32.totalorder %v951, 64
        %vm968 = vcmp.lt.s32.totalorder %v952, 64
        %v969 = vsel %vm953, 1, 0
        %v970 = vsel %vm954, 1, 0
        %v971 = vsel %vm955, 1, 0
        %v972 = vsel %vm956, 1, 0
        %v973 = vsel %vm957, 1, 0
        %v974 = vsel %vm958, 1, 0
        %v975 = vsel %vm959, 1, 0
        %v976 = vsel %vm960, 1, 0
        %v977 = vsel %vm961, 1, 0
        %v978 = vsel %vm962, 1, 0
        %v979 = vsel %vm963, 1, 0
        %v980 = vsel %vm964, 1, 0
        %v981 = vsel %vm965, 1, 0
        %v982 = vsel %vm966, 1, 0
        %v983 = vsel %vm967, 1, 0
        %v984 = vsel %vm968, 1, 0
        %vm985 = vcmp.eq.s32.totalorder %v969, 1
        %vm986 = vcmp.eq.s32.totalorder %v970, 1
        %vm987 = vcmp.eq.s32.totalorder %v971, 1
        %vm988 = vcmp.eq.s32.totalorder %v972, 1
        %vm989 = vcmp.eq.s32.totalorder %v973, 1
        %vm990 = vcmp.eq.s32.totalorder %v974, 1
        %vm991 = vcmp.eq.s32.totalorder %v975, 1
        %vm992 = vcmp.eq.s32.totalorder %v976, 1
        %vm993 = vcmp.eq.s32.totalorder %v977, 1
        %vm994 = vcmp.eq.s32.totalorder %v978, 1
        %vm995 = vcmp.eq.s32.totalorder %v979, 1
        %vm996 = vcmp.eq.s32.totalorder %v980, 1
        %vm997 = vcmp.eq.s32.totalorder %v981, 1
        %vm998 = vcmp.eq.s32.totalorder %v982, 1
        %vm999 = vcmp.eq.s32.totalorder %v983, 1
        %vm1000 = vcmp.eq.s32.totalorder %v984, 1
        %v1001 = vsel %vm985, %v840, -1e+30
        %v1002 = vsel %vm986, %v845, -1e+30
        %v1003 = vsel %vm987, %v850, -1e+30
        %v1004 = vsel %vm988, %v855, -1e+30
        %v1005 = vsel %vm989, %v860, -1e+30
        %v1006 = vsel %vm990, %v865, -1e+30
        %v1007 = vsel %vm991, %v870, -1e+30
        %v1008 = vsel %vm992, %v875, -1e+30
        %v1009 = vsel %vm993, %v880, -1e+30
        %v1010 = vsel %vm994, %v885, -1e+30
        %v1011 = vsel %vm995, %v890, -1e+30
        %v1012 = vsel %vm996, %v895, -1e+30
        %v1013 = vsel %vm997, %v900, -1e+30
        %v1014 = vsel %vm998, %v905, -1e+30
        %v1015 = vsel %vm999, %v910, -1e+30
        %v1016 = vsel %vm1000, %v915, -1e+30
        %v1017 = vld [vmem:[#allocation3] sm:$0x1]
        %v1018 = vmax.f32 %v1001, %v1005
        %v1019 = vmax.f32 %v1002, %v1006
        %v1020 = vmax.f32 %v1003, %v1007
        %v1021 = vmax.f32 %v1004, %v1008
        %v1022 = vmax.f32 %v1018, %v1009
        %v1023 = vmax.f32 %v1019, %v1010
        %v1024 = vmax.f32 %v1020, %v1011
        %v1025 = vmax.f32 %v1021, %v1012
        %v1026 = vmax.f32 %v1022, %v1013
        %v1027 = vmax.f32 %v1023, %v1014
        %v1028 = vmax.f32 %v1024, %v1015
        %v1029 = vmax.f32 %v1025, %v1016
        %v1030 = vmax.f32 %v1026, %v1027
        %v1031 = vmax.f32 %v1028, %v1029
        %v1032 = vmax.f32 %v1030, %v1031
        %v1033 = vrot.slane %v1032, 4
        %v1034 = vmax.f32 %v1032, %v1033
        %v1035 = vrot.slane %v1034, 2
        %v1036 = vmax.f32 %v1034, %v1035
        %v1037 = vrot.slane %v1036, 1
        %v1038 = vmax.f32 %v1036, %v1037
        %v1039 = vmax.f32 %v1017, %v1038
        %v1040 = vsub.f32 %v1017, %v1039
        %v1041 = vmul.f32 %v1040, 1.442695
        %v1042 = vpow.pop %v1041
        %v1044 = vlaneseq
        %v1045 = vshrl.u32 %v1044, 7
        %v1046 = vsub.s32 0, %v1045
        %v1047 = vrot.slane %v1039, %v1046
        %v1049 = vsub.f32 %v1001, %v1047
        %v1050 = vsub.f32 %v1002, %v1047
        %v1051 = vsub.f32 %v1003, %v1047
        %v1052 = vsub.f32 %v1004, %v1047
        %v1053 = vsub.f32 %v1005, %v1047
        %v1054 = vsub.f32 %v1006, %v1047
        %v1055 = vsub.f32 %v1007, %v1047
        %v1056 = vsub.f32 %v1008, %v1047
        %v1057 = vsub.f32 %v1009, %v1047
        %v1058 = vsub.f32 %v1010, %v1047
        %v1059 = vsub.f32 %v1011, %v1047
        %v1060 = vsub.f32 %v1012, %v1047
        %v1061 = vsub.f32 %v1013, %v1047
        %v1062 = vsub.f32 %v1014, %v1047
        %v1063 = vsub.f32 %v1015, %v1047
        %v1064 = vsub.f32 %v1016, %v1047
        %v1065 = vmul.f32 %v1049, 1.442695
        %v1066 = vpow.pop %v1065
        %v1067 = vmul.f32 %v1050, 1.442695
        %v1068 = vpow.pop %v1067
        %v1069 = vmul.f32 %v1051, 1.442695
        %v1070 = vpow.pop %v1069
        %v1071 = vmul.f32 %v1052, 1.442695
        %v1072 = vpow.pop %v1071
        %v1073 = vmul.f32 %v1053, 1.442695
        %v1074 = vpow.pop %v1073
        %v1075 = vmul.f32 %v1054, 1.442695
        %v1076 = vpow.pop %v1075
        %v1077 = vmul.f32 %v1055, 1.442695
        %v1078 = vpow.pop %v1077
        %v1079 = vmul.f32 %v1056, 1.442695
        %v1080 = vpow.pop %v1079
        %v1081 = vmul.f32 %v1057, 1.442695
        %v1082 = vpow.pop %v1081
        %v1083 = vmul.f32 %v1058, 1.442695
        %v1084 = vpow.pop %v1083
        %v1085 = vmul.f32 %v1059, 1.442695
        %v1086 = vpow.pop %v1085
        %v1087 = vmul.f32 %v1060, 1.442695
        %v1088 = vpow.pop %v1087
        %v1089 = vmul.f32 %v1061, 1.442695
        %v1090 = vpow.pop %v1089
        %v1091 = vmul.f32 %v1062, 1.442695
        %v1092 = vpow.pop %v1091
        %v1093 = vmul.f32 %v1063, 1.442695
        %v1094 = vpow.pop %v1093
        %v1095 = vmul.f32 %v1064, 1.442695
        %v1096 = vpow.pop %v1095
        %v1097 = vld [vmem:[#allocation4] sm:$0x1]
        %v1098 = vmul.f32 %v1042, %v1097
        %v1099 = vadd.f32 %v1066, %v1068
        %v1100 = vadd.f32 %v1099, %v1070
        %v1101 = vadd.f32 %v1100, %v1072
        %v1102 = vadd.f32 %v1101, %v1074
        %v1103 = vadd.f32 %v1102, %v1076
        %v1104 = vadd.f32 %v1103, %v1078
        %v1105 = vadd.f32 %v1104, %v1080
        %v1106 = vadd.f32 %v1105, %v1082
        %v1107 = vadd.f32 %v1106, %v1084
        %v1108 = vadd.f32 %v1107, %v1086
        %v1109 = vadd.f32 %v1108, %v1088
        %v1110 = vadd.f32 %v1109, %v1090
        %v1111 = vadd.f32 %v1110, %v1092
        %v1112 = vadd.f32 %v1111, %v1094
        %v1113 = vadd.f32 %v1112, %v1096
        %v1114 = vrot.slane %v1113, 4
        %v1115 = vadd.f32 %v1113, %v1114
        %v1116 = vrot.slane %v1115, 2
        %v1117 = vadd.f32 %v1115, %v1116
        %v1118 = vrot.slane %v1117, 1
        %v1119 = vadd.f32 %v1117, %v1118
        %v1120 = vadd.f32 %v1098, %v1119
        %1121 = vst [vmem:[#allocation4] sm:$0x1] %v1120
        %1122 = vmatprep.subr.mxu0 0.0
        %1123 = vmatpush1.msra.mxu0 %v1066
        %1124 = vmatprep.subr.mxu0 0.0
        %1125 = vmatpush1.msra.mxu0 %v1068
        %1126 = vmatprep.subr.mxu0 0.0
        %1127 = vmatpush1.msra.mxu0 %v1070
        %1128 = vmatprep.subr.mxu0 0.0
        %1129 = vmatpush1.msra.mxu0 %v1072
        %1130 = vmatprep.subr.mxu0 0.0
        %1131 = vmatpush1.msra.mxu0 %v1074
        %1132 = vmatprep.subr.mxu0 0.0
        %1133 = vmatpush1.msra.mxu0 %v1076
        %1134 = vmatprep.subr.mxu0 0.0
        %1135 = vmatpush1.msra.mxu0 %v1078
        %1136 = vmatprep.subr.mxu0 0.0
        %1137 = vmatpush1.msra.mxu0 %v1080
        %1138 = vmatprep.subr.mxu0 0.0
        %1139 = vmatpush1.msra.mxu0 %v1082
        %1140 = vmatprep.subr.mxu0 0.0
        %1141 = vmatpush1.msra.mxu0 %v1084
        %1142 = vmatprep.subr.mxu0 0.0
        %1143 = vmatpush1.msra.mxu0 %v1086
        %1144 = vmatprep.subr.mxu0 0.0
        %1145 = vmatpush1.msra.mxu0 %v1088
        %1146 = vmatprep.subr.mxu0 0.0
        %1147 = vmatpush1.msra.mxu0 %v1090
        %1148 = vmatprep.subr.mxu0 0.0
        %1149 = vmatpush1.msra.mxu0 %v1092
        %1150 = vmatprep.subr.mxu0 0.0
        %1151 = vmatpush1.msra.mxu0 %v1094
        %1152 = vmatprep.subr.mxu0 0.0
        %1153 = vmatpush1.msra.mxu0 %v1096
        %1154 = vmatprep.subr.mxu0 0.0
        %1155 = vmatpush1.msra.mxu0 0.0
        %1156 = vmatprep.subr.mxu0 0.0
        %1157 = vmatpush1.msra.mxu0 0.0
        %1158 = vmatprep.subr.mxu0 0.0
        %1159 = vmatpush1.msra.mxu0 0.0
        %1160 = vmatprep.subr.mxu0 0.0
        %1161 = vmatpush1.msra.mxu0 0.0
        %1162 = vmatprep.subr.mxu0 0.0
        %1163 = vmatpush1.msra.mxu0 0.0
        %1164 = vmatprep.subr.mxu0 0.0
        %1165 = vmatpush1.msra.mxu0 0.0
        %1166 = vmatprep.subr.mxu0 0.0
        %1167 = vmatpush1.msra.mxu0 0.0
        %1168 = vmatprep.subr.mxu0 0.0
        %1169 = vmatpush1.msra.mxu0 0.0
        %1170 = vmatprep.subr.mxu0 0.0
        %1171 = vmatpush1.msra.mxu0 0.0
        %1172 = vmatprep.subr.mxu0 0.0
        %1173 = vmatpush1.msra.mxu0 0.0
        %1174 = vmatprep.subr.mxu0 0.0
        %1175 = vmatpush1.msra.mxu0 0.0
        %1176 = vmatprep.subr.mxu0 0.0
        %1177 = vmatpush1.msra.mxu0 0.0
        %1178 = vmatprep.subr.mxu0 0.0
        %1179 = vmatpush1.msra.mxu0 0.0
        %1180 = vmatprep.subr.mxu0 0.0
        %1181 = vmatpush1.msra.mxu0 0.0
        %1182 = vmatprep.subr.mxu0 0.0
        %1183 = vmatpush1.msra.mxu0 0.0
        %1184 = vmatprep.subr.mxu0 0.0
        %1185 = vmatpush1.msra.mxu0 0.0
        %1186 = vmatprep.mubr.f32.mxu0 0.0
        %1187 = vmatmul.mubr.f32.gmra.mrb[0].mxu0 %v684
        %v1188 = vpop.f32.mrb[0].mxu0
        %v1189 = vadd.f32 0.0, %v1188
        %v1190 = vpop.f32.mrb[0].mxu0
        %1191 = vdwg.mxu0
        %v1192 = vld [vmem:[#allocation5] sm:$0xf]
        %v1194 = vlaneseq
        %v1195 = vshrl.u32 %v1194, 7
        %v1196 = vsub.s32 0, %v1195
        %v1197 = vrot.slane %v1042, %v1196
        %v1199 = vmul.f32 %v1197, %v1192
        %v1200 = vadd.f32 %v1199, %v1189
        %1201 = vst [vmem:[#allocation5] sm:$0xf] %v1200
        %1202 = vst [vmem:[#allocation3] sm:$0x1] %v1039
        // Predicated region
        $region69: #{tpu_custom_call.1} parent=59 // pred_check
          %p1203 = pneg %p433
        $region70: #{tpu_custom_call.1} parent=59 // pred_check_branch
          %1205 = sbr.rel (%p1203) target = $region72
        $region71: #{tpu_custom_call.1} parent=59 // pred_region
          %v1206 = vld [vmem:[#allocation4] sm:$0x1]
          %v1207 = vrcp.pop %v1206
          %v1208 = vld [vmem:[#allocation5] sm:$0xf]
          %v1210 = vlaneseq
          %v1211 = vshrl.u32 %v1210, 7
          %v1212 = vsub.s32 0, %v1211
          %v1213 = vrot.slane %v1207, %v1212
          %v1215 = vmul.f32 %v1208, %v1213
          %v1216 = vld [vmem:[%s8] sm:$0xff]
          %v1217 = vld [vmem:[%s8 + $0x8] sm:$0xff]
          %v1218 = vld [vmem:[%s9] sm:$0xff]
          %v1219 = vld [vmem:[%s9 + $0x8] sm:$0xff]
          %1221 = vset.pattern.permute.xlu0 0
          %1222 = vperm.xlu0 %1221, %v1218
          %v1223 = vpop.permute.xlu0 %1222
          %1226 = vset.pattern.permute.xlu0 0
          %1227 = vperm.xlu0 %1226, %v1219
          %v1228 = vpop.permute.xlu0 %1227
          %v1231 = vsel %vm720, %v1216, 0
          %v1234 = vsel %vm720, %v1217, 0
          %v1237 = vsel %vm769, %v1215, 0
          %1239 = vmatprep.subr.mxu0 0.0
          %1240 = vmatpush1.msra.mxu0 %v1237
          %1241 = vmatprep.subr.mxu0 0.0
          %1242 = vmatpush1.msra.mxu0 0.0
          %1243 = vmatprep.subr.mxu0 0.0
          %1244 = vmatpush1.msra.mxu0 0.0
          %1245 = vmatprep.subr.mxu0 0.0
          %1246 = vmatpush1.msra.mxu0 0.0
          %1247 = vmatprep.subr.mxu0 0.0
          %1248 = vmatpush1.msra.mxu0 0.0
          %1249 = vmatprep.subr.mxu0 0.0
          %1250 = vmatpush1.msra.mxu0 0.0
          %1251 = vmatprep.subr.mxu0 0.0
          %1252 = vmatpush1.msra.mxu0 0.0
          %1253 = vmatprep.subr.mxu0 0.0
          %1254 = vmatpush1.msra.mxu0 0.0
          %1255 = vmatprep.subr.mxu0 0.0
          %1256 = vmatpush1.msra.mxu0 0.0
          %1257 = vmatprep.subr.mxu0 0.0
          %1258 = vmatpush1.msra.mxu0 0.0
          %1259 = vmatprep.subr.mxu0 0.0
          %1260 = vmatpush1.msra.mxu0 0.0
          %1261 = vmatprep.subr.mxu0 0.0
          %1262 = vmatpush1.msra.mxu0 0.0
          %1263 = vmatprep.subr.mxu0 0.0
          %1264 = vmatpush1.msra.mxu0 0.0
          %1265 = vmatprep.subr.mxu0 0.0
          %1266 = vmatpush1.msra.mxu0 0.0
          %1267 = vmatprep.subr.mxu0 0.0
          %1268 = vmatpush1.msra.mxu0 0.0
          %1269 = vmatprep.subr.mxu0 0.0
          %1270 = vmatpush1.msra.mxu0 0.0
          %1271 = vmatprep.subr.mxu0 0.0
          %1272 = vmatpush1.msra.mxu0 0.0
          %1273 = vmatprep.subr.mxu0 0.0
          %1274 = vmatpush1.msra.mxu0 0.0
          %1275 = vmatprep.subr.mxu0 0.0
          %1276 = vmatpush1.msra.mxu0 0.0
          %1277 = vmatprep.subr.mxu0 0.0
          %1278 = vmatpush1.msra.mxu0 0.0
          %1279 = vmatprep.subr.mxu0 0.0
          %1280 = vmatpush1.msra.mxu0 0.0
          %1281 = vmatprep.subr.mxu0 0.0
          %1282 = vmatpush1.msra.mxu0 0.0
          %1283 = vmatprep.subr.mxu0 0.0
          %1284 = vmatpush1.msra.mxu0 0.0
          %1285 = vmatprep.subr.mxu0 0.0
          %1286 = vmatpush1.msra.mxu0 0.0
          %1287 = vmatprep.subr.mxu0 0.0
          %1288 = vmatpush1.msra.mxu0 0.0
          %1289 = vmatprep.subr.mxu0 0.0
          %1290 = vmatpush1.msra.mxu0 0.0
          %1291 = vmatprep.subr.mxu0 0.0
          %1292 = vmatpush1.msra.mxu0 0.0
          %1293 = vmatprep.subr.mxu0 0.0
          %1294 = vmatpush1.msra.mxu0 0.0
          %1295 = vmatprep.subr.mxu0 0.0
          %1296 = vmatpush1.msra.mxu0 0.0
          %1297 = vmatprep.subr.mxu0 0.0
          %1298 = vmatpush1.msra.mxu0 0.0
          %1299 = vmatprep.subr.mxu0 0.0
          %1300 = vmatpush1.msra.mxu0 0.0
          %1301 = vmatprep.subr.mxu0 0.0
          %1302 = vmatpush1.msra.mxu0 0.0
          %1303 = vmatprep.mubr.f32.mxu0 0.0
          %1304 = vmatmul.mubr.f32.gmra.mrb[0].mxu0 %v1231
          %v1305 = vpop.f32.mrb[0].mxu0
          %v1306 = vadd.f32 %v1223, %v1305
          %v1307 = vpop.f32.mrb[0].mxu0
          %1308 = vmatprep.mubr.f32.mxu0 0.0
          %1309 = vmatmul.mubr.f32.gmra.mrb[0].mxu0 %v1234
          %v1310 = vpop.f32.mrb[0].mxu0
          %v1311 = vadd.f32 %v1228, %v1310
          %v1312 = vpop.f32.mrb[0].mxu0
          %1313 = vdwg.mxu0
          %1314 = vst [vmem:[%s424] sm:$0xff] %v1306
          %1315 = vst [vmem:[%s424 + $0x8] sm:$0xff] %v1311
        $region72: #{tpu_custom_call.1} parent=59 // pred_fallthru
          _
        %s1316 = sand.u32 %s280, 1
        %s1317 = scalar_lea.sflag [#allocation8], %s1316
        %s1318 = sand.u32 %s280, 1
        %s1319 = smul.addr %s1318, 16
        %s1320 = scalar_lea.vmem [#allocation9], %s1319
        // Predicated region
        $region73: #{tpu_custom_call.1} parent=59 // pred_check
          %p1321 = pneg %p290
        $region74: #{tpu_custom_call.1} parent=59 // pred_check_branch
          %1323 = sbr.rel (%p1321) target = $region76
        $region75: #{tpu_custom_call.1} parent=59 // pred_region
          %s1325 = ssub.s32 256, 256
          %1326 = vsyncadd %s1317, %s1325
          %s1327 = smul.addr %s32, 2
          %s1328 = sadd.s32 %s33, %s1327
          %s1329 = smul.addr %s1328, 128
          %s1330 = scalar_lea.hbm %s10, %s1329
          %s1331 = sshll.u32 %s1320, 4
          %s1332 = int_to_ptr.vmem [resolvable:$true] %s1331
          %1337 = dma.vmem_to_hbm [thread:$0]  %s1332, 256, %s1330, %s1317, 128, 128, 8
        $region76: #{tpu_custom_call.1} parent=59 // pred_fallthru
          _
      $region60: #{tpu_custom_call.1} parent=5 // pred_fallthru
        _
      %p1338 = scmp.le.s32.totalorder 2, %s22
      // Predicated region
      $region77: #{tpu_custom_call.1} parent=5 // pred_check
        %p1339 = pneg %p1338
      $region78: #{tpu_custom_call.1} parent=5 // pred_check_branch
        %1341 = sbr.rel (%p1339) target = $region80
      $region79: #{tpu_custom_call.1} parent=5 // pred_region
        %s1342 = ssub.s32 %s22, 2
        // Predicated region
        $region81: #{tpu_custom_call.1} parent=79 // pred_check
          %p1343 = pneg %p296
        $region82: #{tpu_custom_call.1} parent=79 // pred_check_branch
          %1345 = sbr.rel (%p1343) target = $region84
        $region83: #{tpu_custom_call.1} parent=79 // pred_region
          %s1346 = sand.u32 %s281, 1
          %s1347 = scalar_lea.sflag [#allocation8], %s1346
          %s1348 = sand.u32 %s281, 1
          %s1349 = smul.addr %s1348, 16
          %s1350 = scalar_lea.vmem [#allocation9], %s1349
          %1351 = dma.done %s1347, 256
        $region84: #{tpu_custom_call.1} parent=79 // pred_fallthru
          _
      $region80: #{tpu_custom_call.1} parent=5 // pred_fallthru
        _
    $region6: #{tpu_custom_call.1} parent=1 // loop_footer
      %s26 = sadd.s32 1, %s22
    $region7: #{tpu_custom_call.1} parent=1 // loop_footer_branch
      %21 = sbr.rel target = $region3
    $region8: #{tpu_custom_call.1} parent=1 // loop_exit
      _
    %1352 = vsyncpa [#allocation7], 1
    %s1353 = scalar_lea.sflag [#allocation7], 1
    %1354 = vsyncpa %s1353, 1
    %1355 = vsyncpa [#allocation8], 1
    %s1356 = scalar_lea.sflag [#allocation8], 1
    %1357 = vsyncpa %s1356, 1

</llo_original>
